<compile_context>
chip_gen: v6e
topology: v6e:2x2x1
jax: 0.10.0
libtpu: 0.0.40
codegen_flags: <defaults>
</compile_context>

<pallas_src>
import math

import jax
import jax.numpy as jnp
import numpy as np
from jax.experimental import pallas as pl
from jax.experimental.pallas import tpu as pltpu


# ---------------------------------------------------------------------------
# One-time parameter re-layout (numpy, outside jit)
# ---------------------------------------------------------------------------
def prepare_lenet5_inputs(params, batch):
    B = int(batch)
    BP = ((B + 7) // 8) * 8          # fc rows padded to a sublane multiple

    w1 = np.asarray(params["conv1_w"], np.float32)   # (6, 1, 5, 5)
    b1 = np.asarray(params["conv1_b"], np.float32)   # (6,)
    w2 = np.asarray(params["conv2_w"], np.float32)   # (16, 6, 5, 5)
    b2 = np.asarray(params["conv2_b"], np.float32)   # (16,)
    f1 = np.asarray(params["fc1_w"], np.float32)     # (120, 256)
    g1 = np.asarray(params["fc1_b"], np.float32)
    f2 = np.asarray(params["fc2_w"], np.float32)     # (84, 120)
    g2 = np.asarray(params["fc2_b"], np.float32)
    f3 = np.asarray(params["fc3_w"], np.float32)     # (10, 84)
    g3 = np.asarray(params["fc3_b"], np.float32)

    # conv1 Toeplitz slab.  K = 5 row-shift blocks x 128 lanes (input cols
    # 0..27 live in lanes 0..27 of each block, rest zero).  Output lanes:
    # EVEN conv columns in the low 128 lanes (lane co*12 + t <-> ow = 2t),
    # ODD conv columns in the high 128 lanes -> pool1 column max is a single
    # aligned max of the two halves and lands directly in the c*12+t layout.
    t1 = np.zeros((5 * 128, 256), np.float32)
    b1l = np.zeros((1, 256), np.float32)
    for co in range(6):
        b1l[0, co * 12:co * 12 + 12] = b1[co]
        b1l[0, 128 + co * 12:128 + co * 12 + 12] = b1[co]
        for i in range(5):
            for j in range(5):
                for t in range(12):
                    t1[i * 128 + 2 * t + j, co * 12 + t] = w1[co, 0, i, j]
                    t1[i * 128 + 2 * t + 1 + j, 128 + co * 12 + t] = w1[co, 0, i, j]

    # pool1 row selection (stride-2 pair max) fused with conv2's 5 row shifts:
    # row (i, b, oh) picks conv1 row 2*(oh+i) (even) / 2*(oh+i)+1 (odd) of
    # image b (c1 rows are indexed b*28 + r).
    ee1 = np.zeros((5 * B * 8, B * 28), np.float32)
    eo1 = np.zeros_like(ee1)
    for i in range(5):
        for b in range(B):
            for oh in range(8):
                r = (i * B + b) * 8 + oh
                ee1[r, b * 28 + 2 * (oh + i)] = 1.0
                eo1[r, b * 28 + 2 * (oh + i) + 1] = 1.0

    # conv2 Toeplitz slab.  K = 5 row-shift blocks x 128 lanes (pool1 lane
    # layout ci*12 + w).  Output: even conv2 cols low half (co*4 + t), odd high.
    t2 = np.zeros((5 * 128, 256), np.float32)
    b2l = np.zeros((1, 256), np.float32)
    for co in range(16):
        b2l[0, co * 4:co * 4 + 4] = b2[co]
        b2l[0, 128 + co * 4:128 + co * 4 + 4] = b2[co]
        for ci in range(6):
            for i in range(5):
                for j in range(5):
                    for t in range(4):
                        t2[i * 128 + ci * 12 + 2 * t + j, co * 4 + t] = w2[co, ci, i, j]
                        t2[i * 128 + ci * 12 + 2 * t + 1 + j,
                           128 + co * 4 + t] = w2[co, ci, i, j]

    # pool2 row selection; each h-block is padded to BP rows (zeros for b>=B).
    ee2 = np.zeros((4 * BP, B * 8), np.float32)
    eo2 = np.zeros_like(ee2)
    for h in range(4):
        for b in range(B):
            ee2[h * BP + b, b * 8 + 2 * h] = 1.0
            eo2[h * BP + b, b * 8 + 2 * h + 1] = 1.0

    # fc1 with the PyTorch NCHW flatten folded into the row layout
    # (K index h*128 + c*4 + w  <->  torch flat index c*16 + h*4 + w).
    wf1 = np.zeros((4 * 128, 128), np.float32)
    for h in range(4):
        for c in range(16):
            for w in range(4):
                wf1[h * 128 + c * 4 + w, :120] = f1[:, c * 16 + h * 4 + w]
    bf1 = np.zeros((1, 128), np.float32)
    bf1[0, :120] = g1

    wf2 = np.zeros((128, 128), np.float32)
    wf2[:120, :84] = f2.T
    bf2 = np.zeros((1, 128), np.float32)
    bf2[0, :84] = g2

    wf3 = np.zeros((128, 128), np.float32)
    wf3[:84, :10] = f3.T
    bf3 = np.zeros((1, 128), np.float32)
    bf3[0, :10] = g3

    return (t1, b1l, ee1, eo1, t2, b2l, ee2, eo2,
            wf1, bf1, wf2, bf2, wf3, bf3)


# ---------------------------------------------------------------------------
# Fused Pallas kernel: entire LeNet5 forward, batch packed into matmul rows
# ---------------------------------------------------------------------------
def _lenet5_fused_kernel(x_ref, t1_ref, b1_ref, ee1_ref, eo1_ref,
                         t2_ref, b2_ref, ee2_ref, eo2_ref,
                         wf1_ref, bf1_ref, wf2_ref, bf2_ref,
                         wf3_ref, bf3_ref, o_ref):
    f32 = jnp.float32
    nrows = x_ref.shape[0] - 8          # B*28 valid input rows
    s1 = ee1_ref.shape[0] // 5          # B*8  rows per conv2 row-shift block
    bp = ee2_ref.shape[0] // 4          # padded fc rows per h block (>=8)

    x = x_ref[...]                                              # (B*28+8, 128)

    # conv1 + ReLU: one MXU matmul, K = 5 row-shifted copies of the input.
    # (The 4 shifted slices below are the only unaligned slices in the kernel.)
    lhs1 = jnp.concatenate([x[i:i + nrows, :] for i in range(5)], axis=1)
    a1 = jnp.maximum(
        jnp.dot(lhs1, t1_ref[...], preferred_element_type=f32) + b1_ref[...],
        0.0)                                                    # (B*28, 256)

    # pool1 columns: even/odd conv columns live in separate 128-lane halves.
    c1 = jnp.maximum(a1[:, :128], a1[:, 128:])                  # (B*28, 128)

    # pool1 rows (stride-2 pair max) fused with the conv2 row-shift gather.
    g = jnp.maximum(
        jnp.dot(ee1_ref[...], c1, preferred_element_type=f32),
        jnp.dot(eo1_ref[...], c1, preferred_element_type=f32))  # (5*B*8, 128)

    # conv2 + ReLU: one matmul, K = 5 aligned 128-lane row-shift blocks.
    lhs2 = jnp.concatenate([g[i * s1:(i + 1) * s1, :] for i in range(5)],
                           axis=1)                              # (B*8, 640)
    a2 = jnp.maximum(
        jnp.dot(lhs2, t2_ref[...], preferred_element_type=f32) + b2_ref[...],
        0.0)                                                    # (B*8, 256)

    # pool2: columns via the lane-halves trick, rows via selection matmuls.
    c2 = jnp.maximum(a2[:, :128], a2[:, 128:])                  # (B*8, 128)
    p2 = jnp.maximum(
        jnp.dot(ee2_ref[...], c2, preferred_element_type=f32),
        jnp.dot(eo2_ref[...], c2, preferred_element_type=f32))  # (4*bp, 128)

    # fc1/fc2/fc3 (NCHW flatten folded into wf1's row layout), all on VMEM.
    f_in = jnp.concatenate([p2[h * bp:(h + 1) * bp, :] for h in range(4)],
                           axis=1)                              # (bp, 512)
    h1 = jnp.maximum(
        jnp.dot(f_in, wf1_ref[...], preferred_element_type=f32) + bf1_ref[...],
        0.0)
    h2 = jnp.maximum(
        jnp.dot(h1, wf2_ref[...], preferred_element_type=f32) + bf2_ref[...],
        0.0)
    o_ref[...] = (jnp.dot(h2, wf3_ref[...], preferred_element_type=f32)
                  + bf3_ref[...])                               # (bp, 128)


def _full_block(shape):
    nd = len(shape)
    return pl.BlockSpec(tuple(shape), lambda i, _nd=nd: (0,) * _nd)


def lenet5_forward(x, consts):
    """x: (B, 1, 28, 28) float32 -> logits (B, 10)."""
    B = x.shape[0]
    assert x.shape[1:] == (1, 28, 28)
    bp = ((B + 7) // 8) * 8
    # Flatten batch*rows into the sublane dim; zero-pad lanes 28->128 and add
    # 8 zero rows so the 4 row-shifted conv1 LHS slices never read junk.
    x2 = jnp.pad(x.reshape(B * 28, 28), ((0, 8), (0, 100)))
    operands = (x2,) + tuple(consts)
    out = pl.pallas_call(
        _lenet5_fused_kernel,
        out_shape=jax.ShapeDtypeStruct((bp, 128), jnp.float32),
        grid=(1,),
        in_specs=[_full_block(op.shape) for op in operands],
        out_specs=_full_block((bp, 128)),
        compiler_params=pltpu.CompilerParams(
            dimension_semantics=("arbitrary",)),
    )(*operands)
    return out[:B, :10]        # drop lane / sublane padding (wrapper slice)


# ---------------------------------------------------------------------------
# Parameters (deterministic, PyTorch-style uniform init bounds) + reference
# ---------------------------------------------------------------------------
def init_lenet5_params(key):
    def uni(k, shape, bound):
        return jax.random.uniform(k, shape, jnp.float32, -bound, bound)

    ks = jax.random.split(key, 10)
    p = {}
    b = 1.0 / math.sqrt(1 * 5 * 5)
    p["conv1_w"] = uni(ks[0], (6, 1, 5, 5), b)
    p["conv1_b"] = uni(ks[1], (6,), b)
    b = 1.0 / math.sqrt(6 * 5 * 5)
    p["conv2_w"] = uni(ks[2], (16, 6, 5, 5), b)
    p["conv2_b"] = uni(ks[3], (16,), b)
    b = 1.0 / math.sqrt(16 * 4 * 4)
    p["fc1_w"] = uni(ks[4], (120, 256), b)
    p["fc1_b"] = uni(ks[5], (120,), b)
    b = 1.0 / math.sqrt(120)
    p["fc2_w"] = uni(ks[6], (84, 120), b)
    p["fc2_b"] = uni(ks[7], (84,), b)
    b = 1.0 / math.sqrt(84)
    p["fc3_w"] = uni(ks[8], (10, 84), b)
    p["fc3_b"] = uni(ks[9], (10,), b)
    return p


def lenet5_ref(params, x):
    def conv(x, w, b):
        y = jax.lax.conv_general_dilated(
            x, w, (1, 1), "VALID", dimension_numbers=("NCHW", "OIHW", "NCHW"))
        return jax.nn.relu(y + b[None, :, None, None])

    def pool(x):
        return jax.lax.reduce_window(
            x, -jnp.inf, jax.lax.max, (1, 1, 2, 2), (1, 1, 2, 2), "VALID")

    x = pool(conv(x, params["conv1_w"], params["conv1_b"]))
    x = pool(conv(x, params["conv2_w"], params["conv2_b"]))
    x = x.reshape(x.shape[0], -1)
    x = jax.nn.relu(x @ params["fc1_w"].T + params["fc1_b"])
    x = jax.nn.relu(x @ params["fc2_w"].T + params["fc2_b"])
    return x @ params["fc3_w"].T + params["fc3_b"]


if __name__ == "__main__":
    key = jax.random.PRNGKey(0)
    pkey, xkey = jax.random.split(key)
    params = init_lenet5_params(pkey)
    x = jax.random.normal(xkey, (2, 1, 28, 28), jnp.float32)  # MNIST-sized, B=2

    consts = prepare_lenet5_inputs(params, batch=x.shape[0])  # re-layout, once
    fwd = jax.jit(lenet5_forward)
    out = jax.block_until_ready(fwd(x, consts))
    assert out.shape == (2, 10)

    ref = lenet5_ref(params, x)
    np.testing.assert_allclose(np.asarray(out), np.asarray(ref),
                               rtol=1e-3, atol=1e-3)
    print("KERNEL_OK")
</pallas_src>

<mosaic_0001>
module attributes {stable_mosaic.version = 11 : i64} {
  func.func @_lenet5_fused_kernel(%arg0: i32, %arg1: memref<64x128xf32, #tpu.memory_space<vmem>>, %arg2: memref<640x256xf32, #tpu.memory_space<vmem>>, %arg3: memref<1x256xf32, #tpu.memory_space<vmem>>, %arg4: memref<80x56xf32, #tpu.memory_space<vmem>>, %arg5: memref<80x56xf32, #tpu.memory_space<vmem>>, %arg6: memref<640x256xf32, #tpu.memory_space<vmem>>, %arg7: memref<1x256xf32, #tpu.memory_space<vmem>>, %arg8: memref<32x16xf32, #tpu.memory_space<vmem>>, %arg9: memref<32x16xf32, #tpu.memory_space<vmem>>, %arg10: memref<512x128xf32, #tpu.memory_space<vmem>>, %arg11: memref<1x128xf32, #tpu.memory_space<vmem>>, %arg12: memref<128x128xf32, #tpu.memory_space<vmem>>, %arg13: memref<1x128xf32, #tpu.memory_space<vmem>>, %arg14: memref<128x128xf32, #tpu.memory_space<vmem>>, %arg15: memref<1x128xf32, #tpu.memory_space<vmem>>, %arg16: memref<8x128xf32, #tpu.memory_space<vmem>>) attributes {dimension_semantics = [#tpu.dimension_semantics<arbitrary>], iteration_bounds = array<i64: 1>, scalar_prefetch = 0 : i64, scratch_operands = 0 : i64, tpu.core_type = #tpu.core_type<tc>, window_params = [{pipeline_mode = #tpu.pipeline_mode<synchronous>, transform_indices = @transform_0, window_bounds = array<i64: 64, 128>}, {pipeline_mode = #tpu.pipeline_mode<synchronous>, transform_indices = @transform_1, window_bounds = array<i64: 640, 256>}, {pipeline_mode = #tpu.pipeline_mode<synchronous>, transform_indices = @transform_2, window_bounds = array<i64: 1, 256>}, {pipeline_mode = #tpu.pipeline_mode<synchronous>, transform_indices = @transform_3, window_bounds = array<i64: 80, 56>}, {pipeline_mode = #tpu.pipeline_mode<synchronous>, transform_indices = @transform_4, window_bounds = array<i64: 80, 56>}, {pipeline_mode = #tpu.pipeline_mode<synchronous>, transform_indices = @transform_5, window_bounds = array<i64: 640, 256>}, {pipeline_mode = #tpu.pipeline_mode<synchronous>, transform_indices = @transform_6, window_bounds = array<i64: 1, 256>}, {pipeline_mode = #tpu.pipeline_mode<synchronous>, transform_indices = @transform_7, window_bounds = array<i64: 32, 16>}, {pipeline_mode = #tpu.pipeline_mode<synchronous>, transform_indices = @transform_8, window_bounds = array<i64: 32, 16>}, {pipeline_mode = #tpu.pipeline_mode<synchronous>, transform_indices = @transform_9, window_bounds = array<i64: 512, 128>}, {pipeline_mode = #tpu.pipeline_mode<synchronous>, transform_indices = @transform_10, window_bounds = array<i64: 1, 128>}, {pipeline_mode = #tpu.pipeline_mode<synchronous>, transform_indices = @transform_11, window_bounds = array<i64: 128, 128>}, {pipeline_mode = #tpu.pipeline_mode<synchronous>, transform_indices = @transform_12, window_bounds = array<i64: 1, 128>}, {pipeline_mode = #tpu.pipeline_mode<synchronous>, transform_indices = @transform_13, window_bounds = array<i64: 128, 128>}, {pipeline_mode = #tpu.pipeline_mode<synchronous>, transform_indices = @transform_14, window_bounds = array<i64: 1, 128>}, {pipeline_mode = #tpu.pipeline_mode<synchronous>, transform_indices = @transform_15, window_bounds = array<i64: 8, 128>}]} {
    %c0 = arith.constant 0 : index
    %c0_0 = arith.constant 0 : index
    %0 = vector.load %arg1[%c0, %c0_0] : memref<64x128xf32, #tpu.memory_space<vmem>>, vector<64x128xf32>
    %1 = vector.extract_strided_slice %0 {offsets = [0, 0], sizes = [56, 128], strides = [1, 1]} : vector<64x128xf32> to vector<56x128xf32>
    %2 = vector.extract_strided_slice %0 {offsets = [1, 0], sizes = [56, 128], strides = [1, 1]} : vector<64x128xf32> to vector<56x128xf32>
    %3 = vector.extract_strided_slice %0 {offsets = [2, 0], sizes = [56, 128], strides = [1, 1]} : vector<64x128xf32> to vector<56x128xf32>
    %4 = vector.extract_strided_slice %0 {offsets = [3, 0], sizes = [56, 128], strides = [1, 1]} : vector<64x128xf32> to vector<56x128xf32>
    %5 = vector.extract_strided_slice %0 {offsets = [4, 0], sizes = [56, 128], strides = [1, 1]} : vector<64x128xf32> to vector<56x128xf32>
    %6 = tpu.concatenate %1, %2, %3, %4, %5 in 1 : vector<56x128xf32>, vector<56x128xf32>, vector<56x128xf32>, vector<56x128xf32>, vector<56x128xf32> -> vector<56x640xf32>
    %c0_1 = arith.constant 0 : index
    %c0_2 = arith.constant 0 : index
    %7 = vector.load %arg2[%c0_1, %c0_2] : memref<640x256xf32, #tpu.memory_space<vmem>>, vector<640x256xf32>
    %cst = arith.constant dense<0.000000e+00> : vector<56x256xf32>
    %8 = tpu.matmul %6, %7, %cst {dimension_numbers = #tpu.dot_dimension_numbers<[1], [0], [0], [1], [0, 0, 1, 1], [], []>} : vector<56x640xf32>, vector<640x256xf32>, vector<56x256xf32> -> vector<56x256xf32>
    %c0_3 = arith.constant 0 : index
    %c0_4 = arith.constant 0 : index
    %9 = vector.load %arg3[%c0_3, %c0_4] : memref<1x256xf32, #tpu.memory_space<vmem>>, vector<1x256xf32>
    %10 = vector.broadcast %9 : vector<1x256xf32> to vector<56x256xf32>
    %11 = arith.addf %8, %10 : vector<56x256xf32>
    %cst_5 = arith.constant 0.000000e+00 : f32
    %12 = vector.broadcast %cst_5 : f32 to vector<56x256xf32>
    %13 = arith.maximumf %11, %12 : vector<56x256xf32>
    %14 = vector.extract_strided_slice %13 {offsets = [0, 0], sizes = [56, 128], strides = [1, 1]} : vector<56x256xf32> to vector<56x128xf32>
    %15 = vector.extract_strided_slice %13 {offsets = [0, 128], sizes = [56, 128], strides = [1, 1]} : vector<56x256xf32> to vector<56x128xf32>
    %16 = arith.maximumf %14, %15 : vector<56x128xf32>
    %c0_6 = arith.constant 0 : index
    %c0_7 = arith.constant 0 : index
    %17 = vector.load %arg4[%c0_6, %c0_7] : memref<80x56xf32, #tpu.memory_space<vmem>>, vector<80x56xf32>
    %cst_8 = arith.constant dense<0.000000e+00> : vector<80x128xf32>
    %18 = tpu.matmul %17, %16, %cst_8 {dimension_numbers = #tpu.dot_dimension_numbers<[1], [0], [0], [1], [0, 0, 1, 1], [], []>} : vector<80x56xf32>, vector<56x128xf32>, vector<80x128xf32> -> vector<80x128xf32>
    %c0_9 = arith.constant 0 : index
    %c0_10 = arith.constant 0 : index
    %19 = vector.load %arg5[%c0_9, %c0_10] : memref<80x56xf32, #tpu.memory_space<vmem>>, vector<80x56xf32>
    %cst_11 = arith.constant dense<0.000000e+00> : vector<80x128xf32>
    %20 = tpu.matmul %19, %16, %cst_11 {dimension_numbers = #tpu.dot_dimension_numbers<[1], [0], [0], [1], [0, 0, 1, 1], [], []>} : vector<80x56xf32>, vector<56x128xf32>, vector<80x128xf32> -> vector<80x128xf32>
    %21 = arith.maximumf %18, %20 : vector<80x128xf32>
    %22 = vector.extract_strided_slice %21 {offsets = [0, 0], sizes = [16, 128], strides = [1, 1]} : vector<80x128xf32> to vector<16x128xf32>
    %23 = vector.extract_strided_slice %21 {offsets = [16, 0], sizes = [16, 128], strides = [1, 1]} : vector<80x128xf32> to vector<16x128xf32>
    %24 = vector.extract_strided_slice %21 {offsets = [32, 0], sizes = [16, 128], strides = [1, 1]} : vector<80x128xf32> to vector<16x128xf32>
    %25 = vector.extract_strided_slice %21 {offsets = [48, 0], sizes = [16, 128], strides = [1, 1]} : vector<80x128xf32> to vector<16x128xf32>
    %26 = vector.extract_strided_slice %21 {offsets = [64, 0], sizes = [16, 128], strides = [1, 1]} : vector<80x128xf32> to vector<16x128xf32>
    %27 = tpu.concatenate %22, %23, %24, %25, %26 in 1 : vector<16x128xf32>, vector<16x128xf32>, vector<16x128xf32>, vector<16x128xf32>, vector<16x128xf32> -> vector<16x640xf32>
    %c0_12 = arith.constant 0 : index
    %c0_13 = arith.constant 0 : index
    %28 = vector.load %arg6[%c0_12, %c0_13] : memref<640x256xf32, #tpu.memory_space<vmem>>, vector<640x256xf32>
    %cst_14 = arith.constant dense<0.000000e+00> : vector<16x256xf32>
    %29 = tpu.matmul %27, %28, %cst_14 {dimension_numbers = #tpu.dot_dimension_numbers<[1], [0], [0], [1], [0, 0, 1, 1], [], []>} : vector<16x640xf32>, vector<640x256xf32>, vector<16x256xf32> -> vector<16x256xf32>
    %c0_15 = arith.constant 0 : index
    %c0_16 = arith.constant 0 : index
    %30 = vector.load %arg7[%c0_15, %c0_16] : memref<1x256xf32, #tpu.memory_space<vmem>>, vector<1x256xf32>
    %31 = vector.broadcast %30 : vector<1x256xf32> to vector<16x256xf32>
    %32 = arith.addf %29, %31 : vector<16x256xf32>
    %cst_17 = arith.constant 0.000000e+00 : f32
    %33 = vector.broadcast %cst_17 : f32 to vector<16x256xf32>
    %34 = arith.maximumf %32, %33 : vector<16x256xf32>
    %35 = vector.extract_strided_slice %34 {offsets = [0, 0], sizes = [16, 128], strides = [1, 1]} : vector<16x256xf32> to vector<16x128xf32>
    %36 = vector.extract_strided_slice %34 {offsets = [0, 128], sizes = [16, 128], strides = [1, 1]} : vector<16x256xf32> to vector<16x128xf32>
    %37 = arith.maximumf %35, %36 : vector<16x128xf32>
    %c0_18 = arith.constant 0 : index
    %c0_19 = arith.constant 0 : index
    %38 = vector.load %arg8[%c0_18, %c0_19] : memref<32x16xf32, #tpu.memory_space<vmem>>, vector<32x16xf32>
    %cst_20 = arith.constant dense<0.000000e+00> : vector<32x128xf32>
    %39 = tpu.matmul %38, %37, %cst_20 {dimension_numbers = #tpu.dot_dimension_numbers<[1], [0], [0], [1], [0, 0, 1, 1], [], []>} : vector<32x16xf32>, vector<16x128xf32>, vector<32x128xf32> -> vector<32x128xf32>
    %c0_21 = arith.constant 0 : index
    %c0_22 = arith.constant 0 : index
    %40 = vector.load %arg9[%c0_21, %c0_22] : memref<32x16xf32, #tpu.memory_space<vmem>>, vector<32x16xf32>
    %cst_23 = arith.constant dense<0.000000e+00> : vector<32x128xf32>
    %41 = tpu.matmul %40, %37, %cst_23 {dimension_numbers = #tpu.dot_dimension_numbers<[1], [0], [0], [1], [0, 0, 1, 1], [], []>} : vector<32x16xf32>, vector<16x128xf32>, vector<32x128xf32> -> vector<32x128xf32>
    %42 = arith.maximumf %39, %41 : vector<32x128xf32>
    %43 = vector.extract_strided_slice %42 {offsets = [0, 0], sizes = [8, 128], strides = [1, 1]} : vector<32x128xf32> to vector<8x128xf32>
    %44 = vector.extract_strided_slice %42 {offsets = [8, 0], sizes = [8, 128], strides = [1, 1]} : vector<32x128xf32> to vector<8x128xf32>
    %45 = vector.extract_strided_slice %42 {offsets = [16, 0], sizes = [8, 128], strides = [1, 1]} : vector<32x128xf32> to vector<8x128xf32>
    %46 = vector.extract_strided_slice %42 {offsets = [24, 0], sizes = [8, 128], strides = [1, 1]} : vector<32x128xf32> to vector<8x128xf32>
    %47 = tpu.concatenate %43, %44, %45, %46 in 1 : vector<8x128xf32>, vector<8x128xf32>, vector<8x128xf32>, vector<8x128xf32> -> vector<8x512xf32>
    %c0_24 = arith.constant 0 : index
    %c0_25 = arith.constant 0 : index
    %48 = vector.load %arg10[%c0_24, %c0_25] : memref<512x128xf32, #tpu.memory_space<vmem>>, vector<512x128xf32>
    %cst_26 = arith.constant dense<0.000000e+00> : vector<8x128xf32>
    %49 = tpu.matmul %47, %48, %cst_26 {dimension_numbers = #tpu.dot_dimension_numbers<[1], [0], [0], [1], [0, 0, 1, 1], [], []>} : vector<8x512xf32>, vector<512x128xf32>, vector<8x128xf32> -> vector<8x128xf32>
    %c0_27 = arith.constant 0 : index
    %c0_28 = arith.constant 0 : index
    %50 = vector.load %arg11[%c0_27, %c0_28] : memref<1x128xf32, #tpu.memory_space<vmem>>, vector<1x128xf32>
    %51 = vector.broadcast %50 : vector<1x128xf32> to vector<8x128xf32>
    %52 = arith.addf %49, %51 : vector<8x128xf32>
    %cst_29 = arith.constant 0.000000e+00 : f32
    %53 = vector.broadcast %cst_29 : f32 to vector<8x128xf32>
    %54 = arith.maximumf %52, %53 : vector<8x128xf32>
    %c0_30 = arith.constant 0 : index
    %c0_31 = arith.constant 0 : index
    %55 = vector.load %arg12[%c0_30, %c0_31] : memref<128x128xf32, #tpu.memory_space<vmem>>, vector<128x128xf32>
    %cst_32 = arith.constant dense<0.000000e+00> : vector<8x128xf32>
    %56 = tpu.matmul %54, %55, %cst_32 {dimension_numbers = #tpu.dot_dimension_numbers<[1], [0], [0], [1], [0, 0, 1, 1], [], []>} : vector<8x128xf32>, vector<128x128xf32>, vector<8x128xf32> -> vector<8x128xf32>
    %c0_33 = arith.constant 0 : index
    %c0_34 = arith.constant 0 : index
    %57 = vector.load %arg13[%c0_33, %c0_34] : memref<1x128xf32, #tpu.memory_space<vmem>>, vector<1x128xf32>
    %58 = vector.broadcast %57 : vector<1x128xf32> to vector<8x128xf32>
    %59 = arith.addf %56, %58 : vector<8x128xf32>
    %cst_35 = arith.constant 0.000000e+00 : f32
    %60 = vector.broadcast %cst_35 : f32 to vector<8x128xf32>
    %61 = arith.maximumf %59, %60 : vector<8x128xf32>
    %c0_36 = arith.constant 0 : index
    %c0_37 = arith.constant 0 : index
    %62 = vector.load %arg14[%c0_36, %c0_37] : memref<128x128xf32, #tpu.memory_space<vmem>>, vector<128x128xf32>
    %cst_38 = arith.constant dense<0.000000e+00> : vector<8x128xf32>
    %63 = tpu.matmul %61, %62, %cst_38 {dimension_numbers = #tpu.dot_dimension_numbers<[1], [0], [0], [1], [0, 0, 1, 1], [], []>} : vector<8x128xf32>, vector<128x128xf32>, vector<8x128xf32> -> vector<8x128xf32>
    %c0_39 = arith.constant 0 : index
    %c0_40 = arith.constant 0 : index
    %64 = vector.load %arg15[%c0_39, %c0_40] : memref<1x128xf32, #tpu.memory_space<vmem>>, vector<1x128xf32>
    %65 = vector.broadcast %64 : vector<1x128xf32> to vector<8x128xf32>
    %66 = arith.addf %63, %65 : vector<8x128xf32>
    %c0_41 = arith.constant 0 : index
    %c0_42 = arith.constant 0 : index
    %67 = vector.load %arg16[%c0_41, %c0_42] : memref<8x128xf32, #tpu.memory_space<vmem>>, vector<8x128xf32>
    tpu.vector_store %arg16[%c0_41, %c0_42], %66 {strides = array<i32>} : memref<8x128xf32, #tpu.memory_space<vmem>>, vector<8x128xf32>,
    return
  }
  func.func @transform_0(%arg0: i32) -> (i32, i32) {
    %c0_i32 = arith.constant 0 : i32
    %c0_i32_0 = arith.constant 0 : i32
    %c0_i32_1 = arith.constant 0 : i32
    return %c0_i32, %c0_i32_0 : i32, i32
  }
  func.func @transform_1(%arg0: i32) -> (i32, i32) {
    %c0_i32 = arith.constant 0 : i32
    %c0_i32_0 = arith.constant 0 : i32
    %c0_i32_1 = arith.constant 0 : i32
    return %c0_i32, %c0_i32_0 : i32, i32
  }
  func.func @transform_2(%arg0: i32) -> (i32, i32) {
    %c0_i32 = arith.constant 0 : i32
    %c0_i32_0 = arith.constant 0 : i32
    %c0_i32_1 = arith.constant 0 : i32
    return %c0_i32, %c0_i32_0 : i32, i32
  }
  func.func @transform_3(%arg0: i32) -> (i32, i32) {
    %c0_i32 = arith.constant 0 : i32
    %c0_i32_0 = arith.constant 0 : i32
    %c0_i32_1 = arith.constant 0 : i32
    return %c0_i32, %c0_i32_0 : i32, i32
  }
  func.func @transform_4(%arg0: i32) -> (i32, i32) {
    %c0_i32 = arith.constant 0 : i32
    %c0_i32_0 = arith.constant 0 : i32
    %c0_i32_1 = arith.constant 0 : i32
    return %c0_i32, %c0_i32_0 : i32, i32
  }
  func.func @transform_5(%arg0: i32) -> (i32, i32) {
    %c0_i32 = arith.constant 0 : i32
    %c0_i32_0 = arith.constant 0 : i32
    %c0_i32_1 = arith.constant 0 : i32
    return %c0_i32, %c0_i32_0 : i32, i32
  }
  func.func @transform_6(%arg0: i32) -> (i32, i32) {
    %c0_i32 = arith.constant 0 : i32
    %c0_i32_0 = arith.constant 0 : i32
    %c0_i32_1 = arith.constant 0 : i32
    return %c0_i32, %c0_i32_0 : i32, i32
  }
  func.func @transform_7(%arg0: i32) -> (i32, i32) {
    %c0_i32 = arith.constant 0 : i32
    %c0_i32_0 = arith.constant 0 : i32
    %c0_i32_1 = arith.constant 0 : i32
    return %c0_i32, %c0_i32_0 : i32, i32
  }
  func.func @transform_8(%arg0: i32) -> (i32, i32) {
    %c0_i32 = arith.constant 0 : i32
    %c0_i32_0 = arith.constant 0 : i32
    %c0_i32_1 = arith.constant 0 : i32
    return %c0_i32, %c0_i32_0 : i32, i32
  }
  func.func @transform_9(%arg0: i32) -> (i32, i32) {
    %c0_i32 = arith.constant 0 : i32
    %c0_i32_0 = arith.constant 0 : i32
    %c0_i32_1 = arith.constant 0 : i32
    return %c0_i32, %c0_i32_0 : i32, i32
  }
  func.func @transform_10(%arg0: i32) -> (i32, i32) {
    %c0_i32 = arith.constant 0 : i32
    %c0_i32_0 = arith.constant 0 : i32
    %c0_i32_1 = arith.constant 0 : i32
    return %c0_i32, %c0_i32_0 : i32, i32
  }
  func.func @transform_11(%arg0: i32) -> (i32, i32) {
    %c0_i32 = arith.constant 0 : i32
    %c0_i32_0 = arith.constant 0 : i32
    %c0_i32_1 = arith.constant 0 : i32
    return %c0_i32, %c0_i32_0 : i32, i32
  }
  func.func @transform_12(%arg0: i32) -> (i32, i32) {
    %c0_i32 = arith.constant 0 : i32
    %c0_i32_0 = arith.constant 0 : i32
    %c0_i32_1 = arith.constant 0 : i32
    return %c0_i32, %c0_i32_0 : i32, i32
  }
  func.func @transform_13(%arg0: i32) -> (i32, i32) {
    %c0_i32 = arith.constant 0 : i32
    %c0_i32_0 = arith.constant 0 : i32
    %c0_i32_1 = arith.constant 0 : i32
    return %c0_i32, %c0_i32_0 : i32, i32
  }
  func.func @transform_14(%arg0: i32) -> (i32, i32) {
    %c0_i32 = arith.constant 0 : i32
    %c0_i32_0 = arith.constant 0 : i32
    %c0_i32_1 = arith.constant 0 : i32
    return %c0_i32, %c0_i32_0 : i32, i32
  }
  func.func @transform_15(%arg0: i32) -> (i32, i32) {
    %c0_i32 = arith.constant 0 : i32
    %c0_i32_0 = arith.constant 0 : i32
    %c0_i32_1 = arith.constant 0 : i32
    return %c0_i32, %c0_i32_0 : i32, i32
  }
}

</mosaic_0001>

<llo_original>
// kernel: lenet5_forward.1
$region0: #{lenet5_forward.1}
  #allocation0 [shape = 'u32[]', space=smem, size = 0x4, offset = 0x4, fixed_abs, tag = 'smem constant byte address 0x4 - core index']
  #allocation1 [shape = 'u32[144,128]{1,0:T(1,128)}', space=vmem, size = 0x12000, scoped, tag = 'internal scratch']
  %s0 = inlined_call_operand.vmem [shape: f32[64,128], index: 0, kind: input, shape index: {}]
  %s1 = inlined_call_operand.hbm [shape: f32[640,256], index: 1, kind: input, shape index: {}]
  %s2 = inlined_call_operand.vmem [shape: f32[1,256], index: 2, kind: input, shape index: {}]
  %s3 = inlined_call_operand.vmem [shape: f32[80,56], index: 3, kind: input, shape index: {}]
  %s4 = inlined_call_operand.vmem [shape: f32[80,56], index: 4, kind: input, shape index: {}]
  %s5 = inlined_call_operand.hbm [shape: f32[640,256], index: 5, kind: input, shape index: {}]
  %s6 = inlined_call_operand.vmem [shape: f32[1,256], index: 6, kind: input, shape index: {}]
  %s7 = inlined_call_operand.vmem [shape: f32[32,16], index: 7, kind: input, shape index: {}]
  %s8 = inlined_call_operand.vmem [shape: f32[32,16], index: 8, kind: input, shape index: {}]
  %s9 = inlined_call_operand.hbm [shape: f32[512,128], index: 9, kind: input, shape index: {}]
  %s10 = inlined_call_operand.vmem [shape: f32[1,128], index: 10, kind: input, shape index: {}]
  %s11 = inlined_call_operand.vmem [shape: f32[128,128], index: 11, kind: input, shape index: {}]
  %s12 = inlined_call_operand.vmem [shape: f32[1,128], index: 12, kind: input, shape index: {}]
  %s13 = inlined_call_operand.vmem [shape: f32[128,128], index: 13, kind: input, shape index: {}]
  %s14 = inlined_call_operand.vmem [shape: f32[1,128], index: 14, kind: input, shape index: {}]
  %s15 = inlined_call_operand.vmem [shape: f32[8,128], index: 15, kind: output, shape index: {}]
  %s16 = sld [smem:[#allocation0]]
  $region82: #{lenet5_forward.1} parent=0
    _
  %s18 = ssub.s32 1, %s16
  %s19 = scalar_select 0, %s18, %s16
  $region1: #{lenet5_forward.1} parent=0
    #allocation2 [shape = 'u8[655360]{0}', space=vmem, size = 0xa0000, scoped, tag = 'input window, operand 1, single buffered']
    #allocation3 [shape = 's32[1]{0}', space=sflag, size = 0x4, scoped, tag = 'scoped memory for lenet5_forward.1']
    #allocation4 [shape = 'u8[655360]{0}', space=vmem, size = 0xa0000, scoped, tag = 'input window, operand 5, single buffered']
    #allocation5 [shape = 's32[1]{0}', space=sflag, size = 0x4, scoped, tag = 'scoped memory for lenet5_forward.1']
    #allocation6 [shape = 'u8[262144]{0}', space=vmem, size = 0x40000, scoped, tag = 'input window, operand 9, single buffered']
    %20 = vsyncpa [#allocation3], 0
    %21 = vsyncpa [#allocation5], 0
    // Predicated region
    $region2: #{lenet5_forward.1} parent=1 // pred_check
      _
    $region3: #{lenet5_forward.1} parent=1 // pred_check_branch
      %23 = sbr.rel (0) target = $region5
    $region4: #{lenet5_forward.1} parent=1 // pred_region
      _
    $region5: #{lenet5_forward.1} parent=1 // pred_fallthru
      _
    // Predicated region
    $region6: #{lenet5_forward.1} parent=1 // pred_check
      _
    $region7: #{lenet5_forward.1} parent=1 // pred_check_branch
      %25 = sbr.rel (0) target = $region9
    $region8: #{lenet5_forward.1} parent=1 // pred_region
      %s27 = ssub.s32 20480, 20480
      %28 = vsyncadd [#allocation3], %s27
      %s29 = sshll.u32 [#allocation2], 4
      %s30 = int_to_ptr.vmem [resolvable:$true] %s29
      %35 = dma.hbm_to_vmem [thread:$0]  %s1, 20480, %s30, [#allocation3], 256, 256, 16
    $region9: #{lenet5_forward.1} parent=1 // pred_fallthru
      _
    // Predicated region
    $region10: #{lenet5_forward.1} parent=1 // pred_check
      _
    $region11: #{lenet5_forward.1} parent=1 // pred_check_branch
      %37 = sbr.rel (0) target = $region13
    $region12: #{lenet5_forward.1} parent=1 // pred_region
      _
    $region13: #{lenet5_forward.1} parent=1 // pred_fallthru
      _
    // Predicated region
    $region14: #{lenet5_forward.1} parent=1 // pred_check
      _
    $region15: #{lenet5_forward.1} parent=1 // pred_check_branch
      %39 = sbr.rel (0) target = $region17
    $region16: #{lenet5_forward.1} parent=1 // pred_region
      _
    $region17: #{lenet5_forward.1} parent=1 // pred_fallthru
      _
    // Predicated region
    $region18: #{lenet5_forward.1} parent=1 // pred_check
      _
    $region19: #{lenet5_forward.1} parent=1 // pred_check_branch
      %41 = sbr.rel (0) target = $region21
    $region20: #{lenet5_forward.1} parent=1 // pred_region
      _
    $region21: #{lenet5_forward.1} parent=1 // pred_fallthru
      _
    // Predicated region
    $region22: #{lenet5_forward.1} parent=1 // pred_check
      _
    $region23: #{lenet5_forward.1} parent=1 // pred_check_branch
      %43 = sbr.rel (0) target = $region25
    $region24: #{lenet5_forward.1} parent=1 // pred_region
      %s45 = ssub.s32 20480, 20480
      %46 = vsyncadd [#allocation5], %s45
      %s47 = sshll.u32 [#allocation4], 4
      %s48 = int_to_ptr.vmem [resolvable:$true] %s47
      %53 = dma.hbm_to_vmem [thread:$0]  %s5, 20480, %s48, [#allocation5], 256, 256, 16
    $region25: #{lenet5_forward.1} parent=1 // pred_fallthru
      _
    // Predicated region
    $region26: #{lenet5_forward.1} parent=1 // pred_check
      _
    $region27: #{lenet5_forward.1} parent=1 // pred_check_branch
      %55 = sbr.rel (0) target = $region29
    $region28: #{lenet5_forward.1} parent=1 // pred_region
      _
    $region29: #{lenet5_forward.1} parent=1 // pred_fallthru
      _
    // Predicated region
    $region30: #{lenet5_forward.1} parent=1 // pred_check
      _
    $region31: #{lenet5_forward.1} parent=1 // pred_check_branch
      %57 = sbr.rel (0) target = $region33
    $region32: #{lenet5_forward.1} parent=1 // pred_region
      _
    $region33: #{lenet5_forward.1} parent=1 // pred_fallthru
      _
    // Predicated region
    $region34: #{lenet5_forward.1} parent=1 // pred_check
      _
    $region35: #{lenet5_forward.1} parent=1 // pred_check_branch
      %59 = sbr.rel (0) target = $region37
    $region36: #{lenet5_forward.1} parent=1 // pred_region
      _
    $region37: #{lenet5_forward.1} parent=1 // pred_fallthru
      _
    // Predicated region
    $region38: #{lenet5_forward.1} parent=1 // pred_check
      _
    $region39: #{lenet5_forward.1} parent=1 // pred_check_branch
      %61 = sbr.rel (0) target = $region41
    $region40: #{lenet5_forward.1} parent=1 // pred_region
      %s63 = ssub.s32 8192, 8192
      %64 = vsyncadd [#allocation5], %s63
      %s65 = sshll.u32 [#allocation6], 4
      %s66 = int_to_ptr.vmem [resolvable:$true] %s65
      %71 = dma.hbm_to_vmem [thread:$0]  %s9, 8192, %s66, [#allocation5], 128, 128, 8
    $region41: #{lenet5_forward.1} parent=1 // pred_fallthru
      _
    // Predicated region
    $region42: #{lenet5_forward.1} parent=1 // pred_check
      _
    $region43: #{lenet5_forward.1} parent=1 // pred_check_branch
      %73 = sbr.rel (0) target = $region45
    $region44: #{lenet5_forward.1} parent=1 // pred_region
      _
    $region45: #{lenet5_forward.1} parent=1 // pred_fallthru
      _
    // Predicated region
    $region46: #{lenet5_forward.1} parent=1 // pred_check
      _
    $region47: #{lenet5_forward.1} parent=1 // pred_check_branch
      %75 = sbr.rel (0) target = $region49
    $region48: #{lenet5_forward.1} parent=1 // pred_region
      _
    $region49: #{lenet5_forward.1} parent=1 // pred_fallthru
      _
    // Predicated region
    $region50: #{lenet5_forward.1} parent=1 // pred_check
      _
    $region51: #{lenet5_forward.1} parent=1 // pred_check_branch
      %77 = sbr.rel (0) target = $region53
    $region52: #{lenet5_forward.1} parent=1 // pred_region
      _
    $region53: #{lenet5_forward.1} parent=1 // pred_fallthru
      _
    // Predicated region
    $region54: #{lenet5_forward.1} parent=1 // pred_check
      _
    $region55: #{lenet5_forward.1} parent=1 // pred_check_branch
      %79 = sbr.rel (0) target = $region57
    $region56: #{lenet5_forward.1} parent=1 // pred_region
      _
    $region57: #{lenet5_forward.1} parent=1 // pred_fallthru
      _
    // Predicated region
    $region58: #{lenet5_forward.1} parent=1 // pred_check
      _
    $region59: #{lenet5_forward.1} parent=1 // pred_check_branch
      %81 = sbr.rel (0) target = $region61
    $region60: #{lenet5_forward.1} parent=1 // pred_region
      _
    $region61: #{lenet5_forward.1} parent=1 // pred_fallthru
      _
    // Predicated region
    $region62: #{lenet5_forward.1} parent=1 // pred_check
      _
    $region63: #{lenet5_forward.1} parent=1 // pred_check_branch
      %83 = sbr.rel (0) target = $region65
    $region64: #{lenet5_forward.1} parent=1 // pred_region
      %84 = dma.done [#allocation3], 20480
    $region65: #{lenet5_forward.1} parent=1 // pred_fallthru
      _
    // Predicated region
    $region66: #{lenet5_forward.1} parent=1 // pred_check
      _
    $region67: #{lenet5_forward.1} parent=1 // pred_check_branch
      %86 = sbr.rel (0) target = $region69
    $region68: #{lenet5_forward.1} parent=1 // pred_region
      %87 = dma.done [#allocation5], 20480
    $region69: #{lenet5_forward.1} parent=1 // pred_fallthru
      _
    // Predicated region
    $region70: #{lenet5_forward.1} parent=1 // pred_check
      _
    $region71: #{lenet5_forward.1} parent=1 // pred_check_branch
      %89 = sbr.rel (0) target = $region73
    $region72: #{lenet5_forward.1} parent=1 // pred_region
      %90 = dma.done [#allocation5], 8192
    $region73: #{lenet5_forward.1} parent=1 // pred_fallthru
      _
    %v91 = vld [vmem:[%s0] sm:$0xff]
    %v92 = vld [vmem:[%s0 + $0x8] sm:$0xff]
    %v93 = vld [vmem:[%s0 + $0x10] sm:$0xff]
    %v94 = vld [vmem:[%s0 + $0x18] sm:$0xff]
    %v95 = vld [vmem:[%s0 + $0x20] sm:$0xff]
    %v96 = vld [vmem:[%s0 + $0x28] sm:$0xff]
    %v97 = vld [vmem:[%s0 + $0x30] sm:$0xff]
    %v98 = vld [vmem:[%s0 + $0x38] sm:$0xff]
    %vm107 = vcmask 1046528
    %v108 = vrot.slane %v91, 1
    %v109 = vrot.slane %v92, 1
    %v110 = vsel %vm107, %v108, %v109
    %v111 = vrot.slane %v93, 1
    %v112 = vsel %vm107, %v109, %v111
    %v113 = vrot.slane %v94, 1
    %v114 = vsel %vm107, %v111, %v113
    %v115 = vrot.slane %v95, 1
    %v116 = vsel %vm107, %v113, %v115
    %v117 = vrot.slane %v96, 1
    %v118 = vsel %vm107, %v115, %v117
    %v119 = vrot.slane %v97, 1
    %v120 = vsel %vm107, %v117, %v119
    %v121 = vrot.slane %v98, 1
    %v122 = vsel %vm107, %v119, %v121
    %vm130 = vcmask 1045504
    %v131 = vrot.slane %v91, 2
    %v132 = vrot.slane %v92, 2
    %v133 = vsel %vm130, %v131, %v132
    %v134 = vrot.slane %v93, 2
    %v135 = vsel %vm130, %v132, %v134
    %v136 = vrot.slane %v94, 2
    %v137 = vsel %vm130, %v134, %v136
    %v138 = vrot.slane %v95, 2
    %v139 = vsel %vm130, %v136, %v138
    %v140 = vrot.slane %v96, 2
    %v141 = vsel %vm130, %v138, %v140
    %v142 = vrot.slane %v97, 2
    %v143 = vsel %vm130, %v140, %v142
    %v144 = vrot.slane %v98, 2
    %v145 = vsel %vm130, %v142, %v144
    %vm153 = vcmask 1044480
    %v154 = vrot.slane %v91, 3
    %v155 = vrot.slane %v92, 3
    %v156 = vsel %vm153, %v154, %v155
    %v157 = vrot.slane %v93, 3
    %v158 = vsel %vm153, %v155, %v157
    %v159 = vrot.slane %v94, 3
    %v160 = vsel %vm153, %v157, %v159
    %v161 = vrot.slane %v95, 3
    %v162 = vsel %vm153, %v159, %v161
    %v163 = vrot.slane %v96, 3
    %v164 = vsel %vm153, %v161, %v163
    %v165 = vrot.slane %v97, 3
    %v166 = vsel %vm153, %v163, %v165
    %v167 = vrot.slane %v98, 3
    %v168 = vsel %vm153, %v165, %v167
    %vm176 = vcmask 1043456
    %v177 = vrot.slane %v91, 4
    %v178 = vrot.slane %v92, 4
    %v179 = vsel %vm176, %v177, %v178
    %v180 = vrot.slane %v93, 4
    %v181 = vsel %vm176, %v178, %v180
    %v182 = vrot.slane %v94, 4
    %v183 = vsel %vm176, %v180, %v182
    %v184 = vrot.slane %v95, 4
    %v185 = vsel %vm176, %v182, %v184
    %v186 = vrot.slane %v96, 4
    %v187 = vsel %vm176, %v184, %v186
    %v188 = vrot.slane %v97, 4
    %v189 = vsel %vm176, %v186, %v188
    %v190 = vrot.slane %v98, 4
    %v191 = vsel %vm176, %v188, %v190
    %v199 = vld [vmem:[#allocation2] sm:$0xff]
    %v200 = vld [vmem:[#allocation2 + $0x8] sm:$0xff]
    %v201 = vld [vmem:[#allocation2 + $0x10] sm:$0xff]
    %v202 = vld [vmem:[#allocation2 + $0x18] sm:$0xff]
    %v203 = vld [vmem:[#allocation2 + $0x20] sm:$0xff]
    %v204 = vld [vmem:[#allocation2 + $0x28] sm:$0xff]
    %v205 = vld [vmem:[#allocation2 + $0x30] sm:$0xff]
    %v206 = vld [vmem:[#allocation2 + $0x38] sm:$0xff]
    %v207 = vld [vmem:[#allocation2 + $0x40] sm:$0xff]
    %v208 = vld [vmem:[#allocation2 + $0x48] sm:$0xff]
    %v209 = vld [vmem:[#allocation2 + $0x50] sm:$0xff]
    %v210 = vld [vmem:[#allocation2 + $0x58] sm:$0xff]
    %v211 = vld [vmem:[#allocation2 + $0x60] sm:$0xff]
    %v212 = vld [vmem:[#allocation2 + $0x68] sm:$0xff]
    %v213 = vld [vmem:[#allocation2 + $0x70] sm:$0xff]
    %v214 = vld [vmem:[#allocation2 + $0x78] sm:$0xff]
    %v215 = vld [vmem:[#allocation2 + $0x80] sm:$0xff]
    %v216 = vld [vmem:[#allocation2 + $0x88] sm:$0xff]
    %v217 = vld [vmem:[#allocation2 + $0x90] sm:$0xff]
    %v218 = vld [vmem:[#allocation2 + $0x98] sm:$0xff]
    %v219 = vld [vmem:[#allocation2 + $0xa0] sm:$0xff]
    %v220 = vld [vmem:[#allocation2 + $0xa8] sm:$0xff]
    %v221 = vld [vmem:[#allocation2 + $0xb0] sm:$0xff]
    %v222 = vld [vmem:[#allocation2 + $0xb8] sm:$0xff]
    %v223 = vld [vmem:[#allocation2 + $0xc0] sm:$0xff]
    %v224 = vld [vmem:[#allocation2 + $0xc8] sm:$0xff]
    %v225 = vld [vmem:[#allocation2 + $0xd0] sm:$0xff]
    %v226 = vld [vmem:[#allocation2 + $0xd8] sm:$0xff]
    %v227 = vld [vmem:[#allocation2 + $0xe0] sm:$0xff]
    %v228 = vld [vmem:[#allocation2 + $0xe8] sm:$0xff]
    %v229 = vld [vmem:[#allocation2 + $0xf0] sm:$0xff]
    %v230 = vld [vmem:[#allocation2 + $0xf8] sm:$0xff]
    %v231 = vld [vmem:[#allocation2 + $0x100] sm:$0xff]
    %v232 = vld [vmem:[#allocation2 + $0x108] sm:$0xff]
    %v233 = vld [vmem:[#allocation2 + $0x110] sm:$0xff]
    %v234 = vld [vmem:[#allocation2 + $0x118] sm:$0xff]
    %v235 = vld [vmem:[#allocation2 + $0x120] sm:$0xff]
    %v236 = vld [vmem:[#allocation2 + $0x128] sm:$0xff]
    %v237 = vld [vmem:[#allocation2 + $0x130] sm:$0xff]
    %v238 = vld [vmem:[#allocation2 + $0x138] sm:$0xff]
    %v239 = vld [vmem:[#allocation2 + $0x140] sm:$0xff]
    %v240 = vld [vmem:[#allocation2 + $0x148] sm:$0xff]
    %v241 = vld [vmem:[#allocation2 + $0x150] sm:$0xff]
    %v242 = vld [vmem:[#allocation2 + $0x158] sm:$0xff]
    %v243 = vld [vmem:[#allocation2 + $0x160] sm:$0xff]
    %v244 = vld [vmem:[#allocation2 + $0x168] sm:$0xff]
    %v245 = vld [vmem:[#allocation2 + $0x170] sm:$0xff]
    %v246 = vld [vmem:[#allocation2 + $0x178] sm:$0xff]
    %v247 = vld [vmem:[#allocation2 + $0x180] sm:$0xff]
    %v248 = vld [vmem:[#allocation2 + $0x188] sm:$0xff]
    %v249 = vld [vmem:[#allocation2 + $0x190] sm:$0xff]
    %v250 = vld [vmem:[#allocation2 + $0x198] sm:$0xff]
    %v251 = vld [vmem:[#allocation2 + $0x1a0] sm:$0xff]
    %v252 = vld [vmem:[#allocation2 + $0x1a8] sm:$0xff]
    %v253 = vld [vmem:[#allocation2 + $0x1b0] sm:$0xff]
    %v254 = vld [vmem:[#allocation2 + $0x1b8] sm:$0xff]
    %v255 = vld [vmem:[#allocation2 + $0x1c0] sm:$0xff]
    %v256 = vld [vmem:[#allocation2 + $0x1c8] sm:$0xff]
    %v257 = vld [vmem:[#allocation2 + $0x1d0] sm:$0xff]
    %v258 = vld [vmem:[#allocation2 + $0x1d8] sm:$0xff]
    %v259 = vld [vmem:[#allocation2 + $0x1e0] sm:$0xff]
    %v260 = vld [vmem:[#allocation2 + $0x1e8] sm:$0xff]
    %v261 = vld [vmem:[#allocation2 + $0x1f0] sm:$0xff]
    %v262 = vld [vmem:[#allocation2 + $0x1f8] sm:$0xff]
    %v263 = vld [vmem:[#allocation2 + $0x200] sm:$0xff]
    %v264 = vld [vmem:[#allocation2 + $0x208] sm:$0xff]
    %v265 = vld [vmem:[#allocation2 + $0x210] sm:$0xff]
    %v266 = vld [vmem:[#allocation2 + $0x218] sm:$0xff]
    %v267 = vld [vmem:[#allocation2 + $0x220] sm:$0xff]
    %v268 = vld [vmem:[#allocation2 + $0x228] sm:$0xff]
    %v269 = vld [vmem:[#allocation2 + $0x230] sm:$0xff]
    %v270 = vld [vmem:[#allocation2 + $0x238] sm:$0xff]
    %v271 = vld [vmem:[#allocation2 + $0x240] sm:$0xff]
    %v272 = vld [vmem:[#allocation2 + $0x248] sm:$0xff]
    %v273 = vld [vmem:[#allocation2 + $0x250] sm:$0xff]
    %v274 = vld [vmem:[#allocation2 + $0x258] sm:$0xff]
    %v275 = vld [vmem:[#allocation2 + $0x260] sm:$0xff]
    %v276 = vld [vmem:[#allocation2 + $0x268] sm:$0xff]
    %v277 = vld [vmem:[#allocation2 + $0x270] sm:$0xff]
    %v278 = vld [vmem:[#allocation2 + $0x278] sm:$0xff]
    %v279 = vld [vmem:[#allocation2 + $0x280] sm:$0xff]
    %v280 = vld [vmem:[#allocation2 + $0x288] sm:$0xff]
    %v281 = vld [vmem:[#allocation2 + $0x290] sm:$0xff]
    %v282 = vld [vmem:[#allocation2 + $0x298] sm:$0xff]
    %v283 = vld [vmem:[#allocation2 + $0x2a0] sm:$0xff]
    %v284 = vld [vmem:[#allocation2 + $0x2a8] sm:$0xff]
    %v285 = vld [vmem:[#allocation2 + $0x2b0] sm:$0xff]
    %v286 = vld [vmem:[#allocation2 + $0x2b8] sm:$0xff]
    %v287 = vld [vmem:[#allocation2 + $0x2c0] sm:$0xff]
    %v288 = vld [vmem:[#allocation2 + $0x2c8] sm:$0xff]
    %v289 = vld [vmem:[#allocation2 + $0x2d0] sm:$0xff]
    %v290 = vld [vmem:[#allocation2 + $0x2d8] sm:$0xff]
    %v291 = vld [vmem:[#allocation2 + $0x2e0] sm:$0xff]
    %v292 = vld [vmem:[#allocation2 + $0x2e8] sm:$0xff]
    %v293 = vld [vmem:[#allocation2 + $0x2f0] sm:$0xff]
    %v294 = vld [vmem:[#allocation2 + $0x2f8] sm:$0xff]
    %v295 = vld [vmem:[#allocation2 + $0x300] sm:$0xff]
    %v296 = vld [vmem:[#allocation2 + $0x308] sm:$0xff]
    %v297 = vld [vmem:[#allocation2 + $0x310] sm:$0xff]
    %v298 = vld [vmem:[#allocation2 + $0x318] sm:$0xff]
    %v299 = vld [vmem:[#allocation2 + $0x320] sm:$0xff]
    %v300 = vld [vmem:[#allocation2 + $0x328] sm:$0xff]
    %v301 = vld [vmem:[#allocation2 + $0x330] sm:$0xff]
    %v302 = vld [vmem:[#allocation2 + $0x338] sm:$0xff]
    %v303 = vld [vmem:[#allocation2 + $0x340] sm:$0xff]
    %v304 = vld [vmem:[#allocation2 + $0x348] sm:$0xff]
    %v305 = vld [vmem:[#allocation2 + $0x350] sm:$0xff]
    %v306 = vld [vmem:[#allocation2 + $0x358] sm:$0xff]
    %v307 = vld [vmem:[#allocation2 + $0x360] sm:$0xff]
    %v308 = vld [vmem:[#allocation2 + $0x368] sm:$0xff]
    %v309 = vld [vmem:[#allocation2 + $0x370] sm:$0xff]
    %v310 = vld [vmem:[#allocation2 + $0x378] sm:$0xff]
    %v311 = vld [vmem:[#allocation2 + $0x380] sm:$0xff]
    %v312 = vld [vmem:[#allocation2 + $0x388] sm:$0xff]
    %v313 = vld [vmem:[#allocation2 + $0x390] sm:$0xff]
    %v314 = vld [vmem:[#allocation2 + $0x398] sm:$0xff]
    %v315 = vld [vmem:[#allocation2 + $0x3a0] sm:$0xff]
    %v316 = vld [vmem:[#allocation2 + $0x3a8] sm:$0xff]
    %v317 = vld [vmem:[#allocation2 + $0x3b0] sm:$0xff]
    %v318 = vld [vmem:[#allocation2 + $0x3b8] sm:$0xff]
    %v319 = vld [vmem:[#allocation2 + $0x3c0] sm:$0xff]
    %v320 = vld [vmem:[#allocation2 + $0x3c8] sm:$0xff]
    %v321 = vld [vmem:[#allocation2 + $0x3d0] sm:$0xff]
    %v322 = vld [vmem:[#allocation2 + $0x3d8] sm:$0xff]
    %v323 = vld [vmem:[#allocation2 + $0x3e0] sm:$0xff]
    %v324 = vld [vmem:[#allocation2 + $0x3e8] sm:$0xff]
    %v325 = vld [vmem:[#allocation2 + $0x3f0] sm:$0xff]
    %v326 = vld [vmem:[#allocation2 + $0x3f8] sm:$0xff]
    %v327 = vld [vmem:[#allocation2 + $0x400] sm:$0xff]
    %v328 = vld [vmem:[#allocation2 + $0x408] sm:$0xff]
    %v329 = vld [vmem:[#allocation2 + $0x410] sm:$0xff]
    %v330 = vld [vmem:[#allocation2 + $0x418] sm:$0xff]
    %v331 = vld [vmem:[#allocation2 + $0x420] sm:$0xff]
    %v332 = vld [vmem:[#allocation2 + $0x428] sm:$0xff]
    %v333 = vld [vmem:[#allocation2 + $0x430] sm:$0xff]
    %v334 = vld [vmem:[#allocation2 + $0x438] sm:$0xff]
    %v335 = vld [vmem:[#allocation2 + $0x440] sm:$0xff]
    %v336 = vld [vmem:[#allocation2 + $0x448] sm:$0xff]
    %v337 = vld [vmem:[#allocation2 + $0x450] sm:$0xff]
    %v338 = vld [vmem:[#allocation2 + $0x458] sm:$0xff]
    %v339 = vld [vmem:[#allocation2 + $0x460] sm:$0xff]
    %v340 = vld [vmem:[#allocation2 + $0x468] sm:$0xff]
    %v341 = vld [vmem:[#allocation2 + $0x470] sm:$0xff]
    %v342 = vld [vmem:[#allocation2 + $0x478] sm:$0xff]
    %v343 = vld [vmem:[#allocation2 + $0x480] sm:$0xff]
    %v344 = vld [vmem:[#allocation2 + $0x488] sm:$0xff]
    %v345 = vld [vmem:[#allocation2 + $0x490] sm:$0xff]
    %v346 = vld [vmem:[#allocation2 + $0x498] sm:$0xff]
    %v347 = vld [vmem:[#allocation2 + $0x4a0] sm:$0xff]
    %v348 = vld [vmem:[#allocation2 + $0x4a8] sm:$0xff]
    %v349 = vld [vmem:[#allocation2 + $0x4b0] sm:$0xff]
    %v350 = vld [vmem:[#allocation2 + $0x4b8] sm:$0xff]
    %v351 = vld [vmem:[#allocation2 + $0x4c0] sm:$0xff]
    %v352 = vld [vmem:[#allocation2 + $0x4c8] sm:$0xff]
    %v353 = vld [vmem:[#allocation2 + $0x4d0] sm:$0xff]
    %v354 = vld [vmem:[#allocation2 + $0x4d8] sm:$0xff]
    %v355 = vld [vmem:[#allocation2 + $0x4e0] sm:$0xff]
    %v356 = vld [vmem:[#allocation2 + $0x4e8] sm:$0xff]
    %v357 = vld [vmem:[#allocation2 + $0x4f0] sm:$0xff]
    %v358 = vld [vmem:[#allocation2 + $0x4f8] sm:$0xff]
    %v359 = vld [vmem:[%s2] sm:$0x3]
    %v361 = vlaneseq
    %v362 = vshrl.u32 %v361, 7
    %v363 = vsub.s32 0, %v362
    %v364 = vrot.slane %v359, %v363
    %v365 = vlaneseq
    %v366 = vshrl.u32 %v365, 7
    %v367 = vsub.s32 1, %v366
    %v368 = vrot.slane %v359, %v367
    %371 = vmatprep.subr.mxu0 %v230
    %372 = vmatpush1.msra.mxu0 %v229
    %373 = vmatprep.subr.mxu0 %v228
    %374 = vmatpush1.msra.mxu0 %v227
    %375 = vmatprep.subr.mxu0 %v226
    %376 = vmatpush1.msra.mxu0 %v225
    %377 = vmatprep.subr.mxu0 %v224
    %378 = vmatpush1.msra.mxu0 %v223
    %379 = vmatprep.subr.mxu0 %v222
    %380 = vmatpush1.msra.mxu0 %v221
    %381 = vmatprep.subr.mxu0 %v220
    %382 = vmatpush1.msra.mxu0 %v219
    %383 = vmatprep.subr.mxu0 %v218
    %384 = vmatpush1.msra.mxu0 %v217
    %385 = vmatprep.subr.mxu0 %v216
    %386 = vmatpush1.msra.mxu0 %v215
    %387 = vmatprep.subr.mxu0 %v214
    %388 = vmatpush1.msra.mxu0 %v213
    %389 = vmatprep.subr.mxu0 %v212
    %390 = vmatpush1.msra.mxu0 %v211
    %391 = vmatprep.subr.mxu0 %v210
    %392 = vmatpush1.msra.mxu0 %v209
    %393 = vmatprep.subr.mxu0 %v208
    %394 = vmatpush1.msra.mxu0 %v207
    %395 = vmatprep.subr.mxu0 %v206
    %396 = vmatpush1.msra.mxu0 %v205
    %397 = vmatprep.subr.mxu0 %v204
    %398 = vmatpush1.msra.mxu0 %v203
    %399 = vmatprep.subr.mxu0 %v202
    %400 = vmatpush1.msra.mxu0 %v201
    %401 = vmatprep.subr.mxu0 %v200
    %402 = vmatpush1.msra.mxu0 %v199
    %403 = vmatprep.subr.mxu0 %v262
    %404 = vmatpush2.msra.mxu0 %v261
    %405 = vmatprep.subr.mxu0 %v260
    %406 = vmatpush2.msra.mxu0 %v259
    %407 = vmatprep.subr.mxu0 %v258
    %408 = vmatpush2.msra.mxu0 %v257
    %409 = vmatprep.subr.mxu0 %v256
    %410 = vmatpush2.msra.mxu0 %v255
    %411 = vmatprep.subr.mxu0 %v254
    %412 = vmatpush2.msra.mxu0 %v253
    %413 = vmatprep.subr.mxu0 %v252
    %414 = vmatpush2.msra.mxu0 %v251
    %415 = vmatprep.subr.mxu0 %v250
    %416 = vmatpush2.msra.mxu0 %v249
    %417 = vmatprep.subr.mxu0 %v248
    %418 = vmatpush2.msra.mxu0 %v247
    %419 = vmatprep.subr.mxu0 %v246
    %420 = vmatpush2.msra.mxu0 %v245
    %421 = vmatprep.subr.mxu0 %v244
    %422 = vmatpush2.msra.mxu0 %v243
    %423 = vmatprep.subr.mxu0 %v242
    %424 = vmatpush2.msra.mxu0 %v241
    %425 = vmatprep.subr.mxu0 %v240
    %426 = vmatpush2.msra.mxu0 %v239
    %427 = vmatprep.subr.mxu0 %v238
    %428 = vmatpush2.msra.mxu0 %v237
    %429 = vmatprep.subr.mxu0 %v236
    %430 = vmatpush2.msra.mxu0 %v235
    %431 = vmatprep.subr.mxu0 %v234
    %432 = vmatpush2.msra.mxu0 %v233
    %433 = vmatprep.subr.mxu0 %v232
    %434 = vmatpush2.msra.mxu0 %v231
    %435 = vmatprep.mubr.f32.mxu0 %v110
    %436 = vmatmul.mubr.f32.gmra.mxu0 %v91
    %v437 = vpop.f32.mrf.mxu0
    %v438 = vadd.f32 %v364, %v437
    %v439 = vpop.f32.mrf.mxu0
    %v440 = vadd.f32 %v368, %v439
    %441 = vmatprep.mubr.f32.mxu0 %v112
    %442 = vmatmul.mubr.f32.gmra.mxu0 %v92
    %v443 = vpop.f32.mrf.mxu0
    %v444 = vadd.f32 %v364, %v443
    %v445 = vpop.f32.mrf.mxu0
    %v446 = vadd.f32 %v368, %v445
    %447 = vmatprep.mubr.f32.mxu0 %v114
    %448 = vmatmul.mubr.f32.gmra.mxu0 %v93
    %v449 = vpop.f32.mrf.mxu0
    %v450 = vadd.f32 %v364, %v449
    %v451 = vpop.f32.mrf.mxu0
    %v452 = vadd.f32 %v368, %v451
    %453 = vmatprep.mubr.f32.mxu0 %v116
    %454 = vmatmul.mubr.f32.gmra.mxu0 %v94
    %v455 = vpop.f32.mrf.mxu0
    %v456 = vadd.f32 %v364, %v455
    %v457 = vpop.f32.mrf.mxu0
    %v458 = vadd.f32 %v368, %v457
    %459 = vmatprep.mubr.f32.mxu0 %v118
    %460 = vmatmul.mubr.f32.gmra.mxu0 %v95
    %v461 = vpop.f32.mrf.mxu0
    %v462 = vadd.f32 %v364, %v461
    %v463 = vpop.f32.mrf.mxu0
    %v464 = vadd.f32 %v368, %v463
    %465 = vmatprep.mubr.f32.mxu0 %v120
    %466 = vmatmul.mubr.f32.gmra.mxu0 %v96
    %v467 = vpop.f32.mrf.mxu0
    %v468 = vadd.f32 %v364, %v467
    %v469 = vpop.f32.mrf.mxu0
    %v470 = vadd.f32 %v368, %v469
    %471 = vmatprep.mubr.f32.mxu0 %v122
    %472 = vmatmul.mubr.f32.gmra.mxu0 %v97
    %v473 = vpop.f32.mrf.mxu0
    %v474 = vadd.f32 %v364, %v473
    %v475 = vpop.f32.mrf.mxu0
    %v476 = vadd.f32 %v368, %v475
    %477 = vdwg.mxu0
    %478 = vmatprep.subr.mxu0 %v294
    %479 = vmatpush1.msra.mxu0 %v293
    %480 = vmatprep.subr.mxu0 %v292
    %481 = vmatpush1.msra.mxu0 %v291
    %482 = vmatprep.subr.mxu0 %v290
    %483 = vmatpush1.msra.mxu0 %v289
    %484 = vmatprep.subr.mxu0 %v288
    %485 = vmatpush1.msra.mxu0 %v287
    %486 = vmatprep.subr.mxu0 %v286
    %487 = vmatpush1.msra.mxu0 %v285
    %488 = vmatprep.subr.mxu0 %v284
    %489 = vmatpush1.msra.mxu0 %v283
    %490 = vmatprep.subr.mxu0 %v282
    %491 = vmatpush1.msra.mxu0 %v281
    %492 = vmatprep.subr.mxu0 %v280
    %493 = vmatpush1.msra.mxu0 %v279
    %494 = vmatprep.subr.mxu0 %v278
    %495 = vmatpush1.msra.mxu0 %v277
    %496 = vmatprep.subr.mxu0 %v276
    %497 = vmatpush1.msra.mxu0 %v275
    %498 = vmatprep.subr.mxu0 %v274
    %499 = vmatpush1.msra.mxu0 %v273
    %500 = vmatprep.subr.mxu0 %v272
    %501 = vmatpush1.msra.mxu0 %v271
    %502 = vmatprep.subr.mxu0 %v270
    %503 = vmatpush1.msra.mxu0 %v269
    %504 = vmatprep.subr.mxu0 %v268
    %505 = vmatpush1.msra.mxu0 %v267
    %506 = vmatprep.subr.mxu0 %v266
    %507 = vmatpush1.msra.mxu0 %v265
    %508 = vmatprep.subr.mxu0 %v264
    %509 = vmatpush1.msra.mxu0 %v263
    %510 = vmatprep.subr.mxu0 %v326
    %511 = vmatpush2.msra.mxu0 %v325
    %512 = vmatprep.subr.mxu0 %v324
    %513 = vmatpush2.msra.mxu0 %v323
    %514 = vmatprep.subr.mxu0 %v322
    %515 = vmatpush2.msra.mxu0 %v321
    %516 = vmatprep.subr.mxu0 %v320
    %517 = vmatpush2.msra.mxu0 %v319
    %518 = vmatprep.subr.mxu0 %v318
    %519 = vmatpush2.msra.mxu0 %v317
    %520 = vmatprep.subr.mxu0 %v316
    %521 = vmatpush2.msra.mxu0 %v315
    %522 = vmatprep.subr.mxu0 %v314
    %523 = vmatpush2.msra.mxu0 %v313
    %524 = vmatprep.subr.mxu0 %v312
    %525 = vmatpush2.msra.mxu0 %v311
    %526 = vmatprep.subr.mxu0 %v310
    %527 = vmatpush2.msra.mxu0 %v309
    %528 = vmatprep.subr.mxu0 %v308
    %529 = vmatpush2.msra.mxu0 %v307
    %530 = vmatprep.subr.mxu0 %v306
    %531 = vmatpush2.msra.mxu0 %v305
    %532 = vmatprep.subr.mxu0 %v304
    %533 = vmatpush2.msra.mxu0 %v303
    %534 = vmatprep.subr.mxu0 %v302
    %535 = vmatpush2.msra.mxu0 %v301
    %536 = vmatprep.subr.mxu0 %v300
    %537 = vmatpush2.msra.mxu0 %v299
    %538 = vmatprep.subr.mxu0 %v298
    %539 = vmatpush2.msra.mxu0 %v297
    %540 = vmatprep.subr.mxu0 %v296
    %541 = vmatpush2.msra.mxu0 %v295
    %542 = vmatprep.mubr.f32.mxu0 %v156
    %543 = vmatmul.mubr.f32.gmra.mxu0 %v133
    %v544 = vpop.f32.mrf.mxu0
    %v545 = vadd.f32 %v438, %v544
    %v546 = vpop.f32.mrf.mxu0
    %v547 = vadd.f32 %v440, %v546
    %548 = vmatprep.mubr.f32.mxu0 %v158
    %549 = vmatmul.mubr.f32.gmra.mxu0 %v135
    %v550 = vpop.f32.mrf.mxu0
    %v551 = vadd.f32 %v444, %v550
    %v552 = vpop.f32.mrf.mxu0
    %v553 = vadd.f32 %v446, %v552
    %554 = vmatprep.mubr.f32.mxu0 %v160
    %555 = vmatmul.mubr.f32.gmra.mxu0 %v137
    %v556 = vpop.f32.mrf.mxu0
    %v557 = vadd.f32 %v450, %v556
    %v558 = vpop.f32.mrf.mxu0
    %v559 = vadd.f32 %v452, %v558
    %560 = vmatprep.mubr.f32.mxu0 %v162
    %561 = vmatmul.mubr.f32.gmra.mxu0 %v139
    %v562 = vpop.f32.mrf.mxu0
    %v563 = vadd.f32 %v456, %v562
    %v564 = vpop.f32.mrf.mxu0
    %v565 = vadd.f32 %v458, %v564
    %566 = vmatprep.mubr.f32.mxu0 %v164
    %567 = vmatmul.mubr.f32.gmra.mxu0 %v141
    %v568 = vpop.f32.mrf.mxu0
    %v569 = vadd.f32 %v462, %v568
    %v570 = vpop.f32.mrf.mxu0
    %v571 = vadd.f32 %v464, %v570
    %572 = vmatprep.mubr.f32.mxu0 %v166
    %573 = vmatmul.mubr.f32.gmra.mxu0 %v143
    %v574 = vpop.f32.mrf.mxu0
    %v575 = vadd.f32 %v468, %v574
    %v576 = vpop.f32.mrf.mxu0
    %v577 = vadd.f32 %v470, %v576
    %578 = vmatprep.mubr.f32.mxu0 %v168
    %579 = vmatmul.mubr.f32.gmra.mxu0 %v145
    %v580 = vpop.f32.mrf.mxu0
    %v581 = vadd.f32 %v474, %v580
    %v582 = vpop.f32.mrf.mxu0
    %v583 = vadd.f32 %v476, %v582
    %584 = vdwg.mxu0
    %585 = vmatprep.subr.mxu0 %v358
    %586 = vmatpush1.msra.mxu0 %v357
    %587 = vmatprep.subr.mxu0 %v356
    %588 = vmatpush1.msra.mxu0 %v355
    %589 = vmatprep.subr.mxu0 %v354
    %590 = vmatpush1.msra.mxu0 %v353
    %591 = vmatprep.subr.mxu0 %v352
    %592 = vmatpush1.msra.mxu0 %v351
    %593 = vmatprep.subr.mxu0 %v350
    %594 = vmatpush1.msra.mxu0 %v349
    %595 = vmatprep.subr.mxu0 %v348
    %596 = vmatpush1.msra.mxu0 %v347
    %597 = vmatprep.subr.mxu0 %v346
    %598 = vmatpush1.msra.mxu0 %v345
    %599 = vmatprep.subr.mxu0 %v344
    %600 = vmatpush1.msra.mxu0 %v343
    %601 = vmatprep.subr.mxu0 %v342
    %602 = vmatpush1.msra.mxu0 %v341
    %603 = vmatprep.subr.mxu0 %v340
    %604 = vmatpush1.msra.mxu0 %v339
    %605 = vmatprep.subr.mxu0 %v338
    %606 = vmatpush1.msra.mxu0 %v337
    %607 = vmatprep.subr.mxu0 %v336
    %608 = vmatpush1.msra.mxu0 %v335
    %609 = vmatprep.subr.mxu0 %v334
    %610 = vmatpush1.msra.mxu0 %v333
    %611 = vmatprep.subr.mxu0 %v332
    %612 = vmatpush1.msra.mxu0 %v331
    %613 = vmatprep.subr.mxu0 %v330
    %614 = vmatpush1.msra.mxu0 %v329
    %615 = vmatprep.subr.mxu0 %v328
    %616 = vmatpush1.msra.mxu0 %v327
    %617 = vmatprep.subr.mxu0 0.0
    %618 = vmatpush2.msra.mxu0 0.0
    %619 = vmatprep.subr.mxu0 0.0
    %620 = vmatpush2.msra.mxu0 0.0
    %621 = vmatprep.subr.mxu0 0.0
    %622 = vmatpush2.msra.mxu0 0.0
    %623 = vmatprep.subr.mxu0 0.0
    %624 = vmatpush2.msra.mxu0 0.0
    %625 = vmatprep.subr.mxu0 0.0
    %626 = vmatpush2.msra.mxu0 0.0
    %627 = vmatprep.subr.mxu0 0.0
    %628 = vmatpush2.msra.mxu0 0.0
    %629 = vmatprep.subr.mxu0 0.0
    %630 = vmatpush2.msra.mxu0 0.0
    %631 = vmatprep.subr.mxu0 0.0
    %632 = vmatpush2.msra.mxu0 0.0
    %633 = vmatprep.subr.mxu0 0.0
    %634 = vmatpush2.msra.mxu0 0.0
    %635 = vmatprep.subr.mxu0 0.0
    %636 = vmatpush2.msra.mxu0 0.0
    %637 = vmatprep.subr.mxu0 0.0
    %638 = vmatpush2.msra.mxu0 0.0
    %639 = vmatprep.subr.mxu0 0.0
    %640 = vmatpush2.msra.mxu0 0.0
    %641 = vmatprep.subr.mxu0 0.0
    %642 = vmatpush2.msra.mxu0 0.0
    %643 = vmatprep.subr.mxu0 0.0
    %644 = vmatpush2.msra.mxu0 0.0
    %645 = vmatprep.subr.mxu0 0.0
    %646 = vmatpush2.msra.mxu0 0.0
    %647 = vmatprep.subr.mxu0 0.0
    %648 = vmatpush2.msra.mxu0 0.0
    %649 = vmatprep.mubr.f32.mxu0 0.0
    %650 = vmatmul.mubr.f32.gmra.mxu0 %v179
    %v651 = vpop.f32.mrf.mxu0
    %v652 = vadd.f32 %v545, %v651
    %v653 = vpop.f32.mrf.mxu0
    %v654 = vadd.f32 %v547, %v653
    %655 = vmatprep.mubr.f32.mxu0 0.0
    %656 = vmatmul.mubr.f32.gmra.mxu0 %v181
    %v657 = vpop.f32.mrf.mxu0
    %v658 = vadd.f32 %v551, %v657
    %v659 = vpop.f32.mrf.mxu0
    %v660 = vadd.f32 %v553, %v659
    %661 = vmatprep.mubr.f32.mxu0 0.0
    %662 = vmatmul.mubr.f32.gmra.mxu0 %v183
    %v663 = vpop.f32.mrf.mxu0
    %v664 = vadd.f32 %v557, %v663
    %v665 = vpop.f32.mrf.mxu0
    %v666 = vadd.f32 %v559, %v665
    %667 = vmatprep.mubr.f32.mxu0 0.0
    %668 = vmatmul.mubr.f32.gmra.mxu0 %v185
    %v669 = vpop.f32.mrf.mxu0
    %v670 = vadd.f32 %v563, %v669
    %v671 = vpop.f32.mrf.mxu0
    %v672 = vadd.f32 %v565, %v671
    %673 = vmatprep.mubr.f32.mxu0 0.0
    %674 = vmatmul.mubr.f32.gmra.mxu0 %v187
    %v675 = vpop.f32.mrf.mxu0
    %v676 = vadd.f32 %v569, %v675
    %v677 = vpop.f32.mrf.mxu0
    %v678 = vadd.f32 %v571, %v677
    %679 = vmatprep.mubr.f32.mxu0 0.0
    %680 = vmatmul.mubr.f32.gmra.mxu0 %v189
    %v681 = vpop.f32.mrf.mxu0
    %v682 = vadd.f32 %v575, %v681
    %v683 = vpop.f32.mrf.mxu0
    %v684 = vadd.f32 %v577, %v683
    %685 = vmatprep.mubr.f32.mxu0 0.0
    %686 = vmatmul.mubr.f32.gmra.mxu0 %v191
    %v687 = vpop.f32.mrf.mxu0
    %v688 = vadd.f32 %v581, %v687
    %v689 = vpop.f32.mrf.mxu0
    %v690 = vadd.f32 %v583, %v689
    %691 = vdwg.mxu0
    %v692 = vmax.f32 %v652, 0.0
    %v693 = vmax.f32 %v654, 0.0
    %v694 = vmax.f32 %v658, 0.0
    %v695 = vmax.f32 %v660, 0.0
    %v696 = vmax.f32 %v664, 0.0
    %v697 = vmax.f32 %v666, 0.0
    %v698 = vmax.f32 %v670, 0.0
    %v699 = vmax.f32 %v672, 0.0
    %v700 = vmax.f32 %v676, 0.0
    %v701 = vmax.f32 %v678, 0.0
    %v702 = vmax.f32 %v682, 0.0
    %v703 = vmax.f32 %v684, 0.0
    %v704 = vmax.f32 %v688, 0.0
    %v705 = vmax.f32 %v690, 0.0
    %v706 = vmax.f32 %v692, %v693
    %v707 = vmax.f32 %v694, %v695
    %v708 = vmax.f32 %v696, %v697
    %v709 = vmax.f32 %v698, %v699
    %v710 = vmax.f32 %v700, %v701
    %v711 = vmax.f32 %v702, %v703
    %v712 = vmax.f32 %v704, %v705
    %v713 = vld [vmem:[%s3] sm:$0xff]
    %v714 = vld [vmem:[%s3 + $0x8] sm:$0xff]
    %v715 = vld [vmem:[%s3 + $0x10] sm:$0xff]
    %v716 = vld [vmem:[%s3 + $0x18] sm:$0xff]
    %v717 = vld [vmem:[%s3 + $0x20] sm:$0xff]
    %v718 = vld [vmem:[%s3 + $0x28] sm:$0xff]
    %v719 = vld [vmem:[%s3 + $0x30] sm:$0xff]
    %v720 = vld [vmem:[%s3 + $0x38] sm:$0xff]
    %v721 = vld [vmem:[%s3 + $0x40] sm:$0xff]
    %v722 = vld [vmem:[%s3 + $0x48] sm:$0xff]
    %vm723 = vcmask 457728
    %v725 = vsel %vm723, %v713, 0
    %v728 = vsel %vm723, %v714, 0
    %v731 = vsel %vm723, %v715, 0
    %v734 = vsel %vm723, %v716, 0
    %v737 = vsel %vm723, %v717, 0
    %v740 = vsel %vm723, %v718, 0
    %v743 = vsel %vm723, %v719, 0
    %v746 = vsel %vm723, %v720, 0
    %v749 = vsel %vm723, %v721, 0
    %v752 = vsel %vm723, %v722, 0
    %754 = vmatprep.subr.mxu0 0.0
    %755 = vmatpush1.msra.mxu0 0.0
    %756 = vmatprep.subr.mxu0 0.0
    %757 = vmatpush1.msra.mxu0 0.0
    %758 = vmatprep.subr.mxu0 0.0
    %759 = vmatpush1.msra.mxu0 0.0
    %760 = vmatprep.subr.mxu0 0.0
    %761 = vmatpush1.msra.mxu0 0.0
    %762 = vmatprep.subr.mxu0 0.0
    %763 = vmatpush1.msra.mxu0 0.0
    %764 = vmatprep.subr.mxu0 0.0
    %765 = vmatpush1.msra.mxu0 0.0
    %766 = vmatprep.subr.mxu0 0.0
    %767 = vmatpush1.msra.mxu0 0.0
    %768 = vmatprep.subr.mxu0 0.0
    %769 = vmatpush1.msra.mxu0 0.0
    %770 = vmatprep.subr.mxu0 0.0
    %771 = vmatpush1.msra.mxu0 0.0
    %772 = vmatprep.subr.mxu0 0.0
    %773 = vmatpush1.msra.mxu0 %v712
    %774 = vmatprep.subr.mxu0 0.0
    %775 = vmatpush1.msra.mxu0 %v711
    %776 = vmatprep.subr.mxu0 0.0
    %777 = vmatpush1.msra.mxu0 %v710
    %778 = vmatprep.subr.mxu0 0.0
    %779 = vmatpush1.msra.mxu0 %v709
    %780 = vmatprep.subr.mxu0 0.0
    %781 = vmatpush1.msra.mxu0 %v708
    %782 = vmatprep.subr.mxu0 0.0
    %783 = vmatpush1.msra.mxu0 %v707
    %784 = vmatprep.subr.mxu0 0.0
    %785 = vmatpush1.msra.mxu0 %v706
    %786 = vmatprep.subr.mxu0 0.0
    %787 = vmatpush2.msra.mxu0 0.0
    %788 = vmatprep.subr.mxu0 0.0
    %789 = vmatpush2.msra.mxu0 0.0
    %790 = vmatprep.subr.mxu0 0.0
    %791 = vmatpush2.msra.mxu0 0.0
    %792 = vmatprep.subr.mxu0 0.0
    %793 = vmatpush2.msra.mxu0 0.0
    %794 = vmatprep.subr.mxu0 0.0
    %795 = vmatpush2.msra.mxu0 0.0
    %796 = vmatprep.subr.mxu0 0.0
    %797 = vmatpush2.msra.mxu0 0.0
    %798 = vmatprep.subr.mxu0 0.0
    %799 = vmatpush2.msra.mxu0 0.0
    %800 = vmatprep.subr.mxu0 0.0
    %801 = vmatpush2.msra.mxu0 0.0
    %802 = vmatprep.subr.mxu0 0.0
    %803 = vmatpush2.msra.mxu0 0.0
    %804 = vmatprep.subr.mxu0 0.0
    %805 = vmatpush2.msra.mxu0 0.0
    %806 = vmatprep.subr.mxu0 0.0
    %807 = vmatpush2.msra.mxu0 0.0
    %808 = vmatprep.subr.mxu0 0.0
    %809 = vmatpush2.msra.mxu0 0.0
    %810 = vmatprep.subr.mxu0 0.0
    %811 = vmatpush2.msra.mxu0 0.0
    %812 = vmatprep.subr.mxu0 0.0
    %813 = vmatpush2.msra.mxu0 0.0
    %814 = vmatprep.subr.mxu0 0.0
    %815 = vmatpush2.msra.mxu0 0.0
    %816 = vmatprep.subr.mxu0 0.0
    %817 = vmatpush2.msra.mxu0 0.0
    %818 = vmatprep.mubr.f32.mxu0 0.0
    %819 = vmatmul.mubr.f32.gmra.mxu0 %v725
    %v820 = vpop.f32.mrf.mxu0
    %v821 = vadd.f32 0.0, %v820
    %v822 = vpop.f32.mrf.mxu0
    %823 = vmatprep.mubr.f32.mxu0 0.0
    %824 = vmatmul.mubr.f32.gmra.mxu0 %v728
    %v825 = vpop.f32.mrf.mxu0
    %v826 = vadd.f32 0.0, %v825
    %v827 = vpop.f32.mrf.mxu0
    %828 = vmatprep.mubr.f32.mxu0 0.0
    %829 = vmatmul.mubr.f32.gmra.mxu0 %v731
    %v830 = vpop.f32.mrf.mxu0
    %v831 = vadd.f32 0.0, %v830
    %v832 = vpop.f32.mrf.mxu0
    %833 = vmatprep.mubr.f32.mxu0 0.0
    %834 = vmatmul.mubr.f32.gmra.mxu0 %v734
    %v835 = vpop.f32.mrf.mxu0
    %v836 = vadd.f32 0.0, %v835
    %v837 = vpop.f32.mrf.mxu0
    %838 = vmatprep.mubr.f32.mxu0 0.0
    %839 = vmatmul.mubr.f32.gmra.mxu0 %v737
    %v840 = vpop.f32.mrf.mxu0
    %v841 = vadd.f32 0.0, %v840
    %v842 = vpop.f32.mrf.mxu0
    %843 = vmatprep.mubr.f32.mxu0 0.0
    %844 = vmatmul.mubr.f32.gmra.mxu0 %v740
    %v845 = vpop.f32.mrf.mxu0
    %v846 = vadd.f32 0.0, %v845
    %v847 = vpop.f32.mrf.mxu0
    %848 = vmatprep.mubr.f32.mxu0 0.0
    %849 = vmatmul.mubr.f32.gmra.mxu0 %v743
    %v850 = vpop.f32.mrf.mxu0
    %v851 = vadd.f32 0.0, %v850
    %v852 = vpop.f32.mrf.mxu0
    %853 = vmatprep.mubr.f32.mxu0 0.0
    %854 = vmatmul.mubr.f32.gmra.mxu0 %v746
    %v855 = vpop.f32.mrf.mxu0
    %v856 = vadd.f32 0.0, %v855
    %v857 = vpop.f32.mrf.mxu0
    %858 = vmatprep.mubr.f32.mxu0 0.0
    %859 = vmatmul.mubr.f32.gmra.mxu0 %v749
    %v860 = vpop.f32.mrf.mxu0
    %v861 = vadd.f32 0.0, %v860
    %v862 = vpop.f32.mrf.mxu0
    %863 = vmatprep.mubr.f32.mxu0 0.0
    %864 = vmatmul.mubr.f32.gmra.mxu0 %v752
    %v865 = vpop.f32.mrf.mxu0
    %v866 = vadd.f32 0.0, %v865
    %v867 = vpop.f32.mrf.mxu0
    %868 = vdwg.mxu0
    %v869 = vld [vmem:[%s4] sm:$0xff]
    %v870 = vld [vmem:[%s4 + $0x8] sm:$0xff]
    %v871 = vld [vmem:[%s4 + $0x10] sm:$0xff]
    %v872 = vld [vmem:[%s4 + $0x18] sm:$0xff]
    %v873 = vld [vmem:[%s4 + $0x20] sm:$0xff]
    %v874 = vld [vmem:[%s4 + $0x28] sm:$0xff]
    %v875 = vld [vmem:[%s4 + $0x30] sm:$0xff]
    %v876 = vld [vmem:[%s4 + $0x38] sm:$0xff]
    %v877 = vld [vmem:[%s4 + $0x40] sm:$0xff]
    %v878 = vld [vmem:[%s4 + $0x48] sm:$0xff]
    %v880 = vsel %vm723, %v869, 0
    %v883 = vsel %vm723, %v870, 0
    %v886 = vsel %vm723, %v871, 0
    %v889 = vsel %vm723, %v872, 0
    %v892 = vsel %vm723, %v873, 0
    %v895 = vsel %vm723, %v874, 0
    %v898 = vsel %vm723, %v875, 0
    %v901 = vsel %vm723, %v876, 0
    %v904 = vsel %vm723, %v877, 0
    %v907 = vsel %vm723, %v878, 0
    %909 = vmatprep.subr.mxu0 0.0
    %910 = vmatpush1.msra.mxu0 0.0
    %911 = vmatprep.subr.mxu0 0.0
    %912 = vmatpush1.msra.mxu0 0.0
    %913 = vmatprep.subr.mxu0 0.0
    %914 = vmatpush1.msra.mxu0 0.0
    %915 = vmatprep.subr.mxu0 0.0
    %916 = vmatpush1.msra.mxu0 0.0
    %917 = vmatprep.subr.mxu0 0.0
    %918 = vmatpush1.msra.mxu0 0.0
    %919 = vmatprep.subr.mxu0 0.0
    %920 = vmatpush1.msra.mxu0 0.0
    %921 = vmatprep.subr.mxu0 0.0
    %922 = vmatpush1.msra.mxu0 0.0
    %923 = vmatprep.subr.mxu0 0.0
    %924 = vmatpush1.msra.mxu0 0.0
    %925 = vmatprep.subr.mxu0 0.0
    %926 = vmatpush1.msra.mxu0 0.0
    %927 = vmatprep.subr.mxu0 0.0
    %928 = vmatpush1.msra.mxu0 %v712
    %929 = vmatprep.subr.mxu0 0.0
    %930 = vmatpush1.msra.mxu0 %v711
    %931 = vmatprep.subr.mxu0 0.0
    %932 = vmatpush1.msra.mxu0 %v710
    %933 = vmatprep.subr.mxu0 0.0
    %934 = vmatpush1.msra.mxu0 %v709
    %935 = vmatprep.subr.mxu0 0.0
    %936 = vmatpush1.msra.mxu0 %v708
    %937 = vmatprep.subr.mxu0 0.0
    %938 = vmatpush1.msra.mxu0 %v707
    %939 = vmatprep.subr.mxu0 0.0
    %940 = vmatpush1.msra.mxu0 %v706
    %941 = vmatprep.subr.mxu0 0.0
    %942 = vmatpush2.msra.mxu0 0.0
    %943 = vmatprep.subr.mxu0 0.0
    %944 = vmatpush2.msra.mxu0 0.0
    %945 = vmatprep.subr.mxu0 0.0
    %946 = vmatpush2.msra.mxu0 0.0
    %947 = vmatprep.subr.mxu0 0.0
    %948 = vmatpush2.msra.mxu0 0.0
    %949 = vmatprep.subr.mxu0 0.0
    %950 = vmatpush2.msra.mxu0 0.0
    %951 = vmatprep.subr.mxu0 0.0
    %952 = vmatpush2.msra.mxu0 0.0
    %953 = vmatprep.subr.mxu0 0.0
    %954 = vmatpush2.msra.mxu0 0.0
    %955 = vmatprep.subr.mxu0 0.0
    %956 = vmatpush2.msra.mxu0 0.0
    %957 = vmatprep.subr.mxu0 0.0
    %958 = vmatpush2.msra.mxu0 0.0
    %959 = vmatprep.subr.mxu0 0.0
    %960 = vmatpush2.msra.mxu0 0.0
    %961 = vmatprep.subr.mxu0 0.0
    %962 = vmatpush2.msra.mxu0 0.0
    %963 = vmatprep.subr.mxu0 0.0
    %964 = vmatpush2.msra.mxu0 0.0
    %965 = vmatprep.subr.mxu0 0.0
    %966 = vmatpush2.msra.mxu0 0.0
    %967 = vmatprep.subr.mxu0 0.0
    %968 = vmatpush2.msra.mxu0 0.0
    %969 = vmatprep.subr.mxu0 0.0
    %970 = vmatpush2.msra.mxu0 0.0
    %971 = vmatprep.subr.mxu0 0.0
    %972 = vmatpush2.msra.mxu0 0.0
    %973 = vmatprep.mubr.f32.mxu0 0.0
    %974 = vmatmul.mubr.f32.gmra.mxu0 %v880
    %v975 = vpop.f32.mrf.mxu0
    %v976 = vadd.f32 0.0, %v975
    %v977 = vpop.f32.mrf.mxu0
    %978 = vmatprep.mubr.f32.mxu0 0.0
    %979 = vmatmul.mubr.f32.gmra.mxu0 %v883
    %v980 = vpop.f32.mrf.mxu0
    %v981 = vadd.f32 0.0, %v980
    %v982 = vpop.f32.mrf.mxu0
    %983 = vmatprep.mubr.f32.mxu0 0.0
    %984 = vmatmul.mubr.f32.gmra.mxu0 %v886
    %v985 = vpop.f32.mrf.mxu0
    %v986 = vadd.f32 0.0, %v985
    %v987 = vpop.f32.mrf.mxu0
    %988 = vmatprep.mubr.f32.mxu0 0.0
    %989 = vmatmul.mubr.f32.gmra.mxu0 %v889
    %v990 = vpop.f32.mrf.mxu0
    %v991 = vadd.f32 0.0, %v990
    %v992 = vpop.f32.mrf.mxu0
    %993 = vmatprep.mubr.f32.mxu0 0.0
    %994 = vmatmul.mubr.f32.gmra.mxu0 %v892
    %v995 = vpop.f32.mrf.mxu0
    %v996 = vadd.f32 0.0, %v995
    %v997 = vpop.f32.mrf.mxu0
    %998 = vmatprep.mubr.f32.mxu0 0.0
    %999 = vmatmul.mubr.f32.gmra.mxu0 %v895
    %v1000 = vpop.f32.mrf.mxu0
    %v1001 = vadd.f32 0.0, %v1000
    %v1002 = vpop.f32.mrf.mxu0
    %1003 = vmatprep.mubr.f32.mxu0 0.0
    %1004 = vmatmul.mubr.f32.gmra.mxu0 %v898
    %v1005 = vpop.f32.mrf.mxu0
    %v1006 = vadd.f32 0.0, %v1005
    %v1007 = vpop.f32.mrf.mxu0
    %1008 = vmatprep.mubr.f32.mxu0 0.0
    %1009 = vmatmul.mubr.f32.gmra.mxu0 %v901
    %v1010 = vpop.f32.mrf.mxu0
    %v1011 = vadd.f32 0.0, %v1010
    %v1012 = vpop.f32.mrf.mxu0
    %1013 = vmatprep.mubr.f32.mxu0 0.0
    %1014 = vmatmul.mubr.f32.gmra.mxu0 %v904
    %v1015 = vpop.f32.mrf.mxu0
    %v1016 = vadd.f32 0.0, %v1015
    %v1017 = vpop.f32.mrf.mxu0
    %1018 = vmatprep.mubr.f32.mxu0 0.0
    %1019 = vmatmul.mubr.f32.gmra.mxu0 %v907
    %v1020 = vpop.f32.mrf.mxu0
    %v1021 = vadd.f32 0.0, %v1020
    %v1022 = vpop.f32.mrf.mxu0
    %1023 = vdwg.mxu0
    %v1024 = vmax.f32 %v821, %v976
    %v1025 = vmax.f32 %v826, %v981
    %v1026 = vmax.f32 %v831, %v986
    %v1027 = vmax.f32 %v836, %v991
    %v1028 = vmax.f32 %v841, %v996
    %v1029 = vmax.f32 %v846, %v1001
    %v1030 = vmax.f32 %v851, %v1006
    %v1031 = vmax.f32 %v856, %v1011
    %v1032 = vmax.f32 %v861, %v1016
    %v1033 = vmax.f32 %v866, %v1021
    %v1034 = vld [vmem:[#allocation4] sm:$0xff]
    %v1035 = vld [vmem:[#allocation4 + $0x8] sm:$0xff]
    %v1036 = vld [vmem:[#allocation4 + $0x10] sm:$0xff]
    %v1037 = vld [vmem:[#allocation4 + $0x18] sm:$0xff]
    %v1038 = vld [vmem:[#allocation4 + $0x20] sm:$0xff]
    %v1039 = vld [vmem:[#allocation4 + $0x28] sm:$0xff]
    %v1040 = vld [vmem:[#allocation4 + $0x30] sm:$0xff]
    %v1041 = vld [vmem:[#allocation4 + $0x38] sm:$0xff]
    %v1042 = vld [vmem:[#allocation4 + $0x40] sm:$0xff]
    %v1043 = vld [vmem:[#allocation4 + $0x48] sm:$0xff]
    %v1044 = vld [vmem:[#allocation4 + $0x50] sm:$0xff]
    %v1045 = vld [vmem:[#allocation4 + $0x58] sm:$0xff]
    %v1046 = vld [vmem:[#allocation4 + $0x60] sm:$0xff]
    %v1047 = vld [vmem:[#allocation4 + $0x68] sm:$0xff]
    %v1048 = vld [vmem:[#allocation4 + $0x70] sm:$0xff]
    %v1049 = vld [vmem:[#allocation4 + $0x78] sm:$0xff]
    %v1050 = vld [vmem:[#allocation4 + $0x80] sm:$0xff]
    %v1051 = vld [vmem:[#allocation4 + $0x88] sm:$0xff]
    %v1052 = vld [vmem:[#allocation4 + $0x90] sm:$0xff]
    %v1053 = vld [vmem:[#allocation4 + $0x98] sm:$0xff]
    %v1054 = vld [vmem:[#allocation4 + $0xa0] sm:$0xff]
    %v1055 = vld [vmem:[#allocation4 + $0xa8] sm:$0xff]
    %v1056 = vld [vmem:[#allocation4 + $0xb0] sm:$0xff]
    %v1057 = vld [vmem:[#allocation4 + $0xb8] sm:$0xff]
    %v1058 = vld [vmem:[#allocation4 + $0xc0] sm:$0xff]
    %v1059 = vld [vmem:[#allocation4 + $0xc8] sm:$0xff]
    %v1060 = vld [vmem:[#allocation4 + $0xd0] sm:$0xff]
    %v1061 = vld [vmem:[#allocation4 + $0xd8] sm:$0xff]
    %v1062 = vld [vmem:[#allocation4 + $0xe0] sm:$0xff]
    %v1063 = vld [vmem:[#allocation4 + $0xe8] sm:$0xff]
    %v1064 = vld [vmem:[#allocation4 + $0xf0] sm:$0xff]
    %v1065 = vld [vmem:[#allocation4 + $0xf8] sm:$0xff]
    %v1066 = vld [vmem:[#allocation4 + $0x100] sm:$0xff]
    %v1067 = vld [vmem:[#allocation4 + $0x108] sm:$0xff]
    %v1068 = vld [vmem:[#allocation4 + $0x110] sm:$0xff]
    %v1069 = vld [vmem:[#allocation4 + $0x118] sm:$0xff]
    %v1070 = vld [vmem:[#allocation4 + $0x120] sm:$0xff]
    %v1071 = vld [vmem:[#allocation4 + $0x128] sm:$0xff]
    %v1072 = vld [vmem:[#allocation4 + $0x130] sm:$0xff]
    %v1073 = vld [vmem:[#allocation4 + $0x138] sm:$0xff]
    %v1074 = vld [vmem:[#allocation4 + $0x140] sm:$0xff]
    %v1075 = vld [vmem:[#allocation4 + $0x148] sm:$0xff]
    %v1076 = vld [vmem:[#allocation4 + $0x150] sm:$0xff]
    %v1077 = vld [vmem:[#allocation4 + $0x158] sm:$0xff]
    %v1078 = vld [vmem:[#allocation4 + $0x160] sm:$0xff]
    %v1079 = vld [vmem:[#allocation4 + $0x168] sm:$0xff]
    %v1080 = vld [vmem:[#allocation4 + $0x170] sm:$0xff]
    %v1081 = vld [vmem:[#allocation4 + $0x178] sm:$0xff]
    %v1082 = vld [vmem:[#allocation4 + $0x180] sm:$0xff]
    %v1083 = vld [vmem:[#allocation4 + $0x188] sm:$0xff]
    %v1084 = vld [vmem:[#allocation4 + $0x190] sm:$0xff]
    %v1085 = vld [vmem:[#allocation4 + $0x198] sm:$0xff]
    %v1086 = vld [vmem:[#allocation4 + $0x1a0] sm:$0xff]
    %v1087 = vld [vmem:[#allocation4 + $0x1a8] sm:$0xff]
    %v1088 = vld [vmem:[#allocation4 + $0x1b0] sm:$0xff]
    %v1089 = vld [vmem:[#allocation4 + $0x1b8] sm:$0xff]
    %v1090 = vld [vmem:[#allocation4 + $0x1c0] sm:$0xff]
    %v1091 = vld [vmem:[#allocation4 + $0x1c8] sm:$0xff]
    %v1092 = vld [vmem:[#allocation4 + $0x1d0] sm:$0xff]
    %v1093 = vld [vmem:[#allocation4 + $0x1d8] sm:$0xff]
    %v1094 = vld [vmem:[#allocation4 + $0x1e0] sm:$0xff]
    %v1095 = vld [vmem:[#allocation4 + $0x1e8] sm:$0xff]
    %v1096 = vld [vmem:[#allocation4 + $0x1f0] sm:$0xff]
    %v1097 = vld [vmem:[#allocation4 + $0x1f8] sm:$0xff]
    %v1098 = vld [vmem:[#allocation4 + $0x200] sm:$0xff]
    %v1099 = vld [vmem:[#allocation4 + $0x208] sm:$0xff]
    %v1100 = vld [vmem:[#allocation4 + $0x210] sm:$0xff]
    %v1101 = vld [vmem:[#allocation4 + $0x218] sm:$0xff]
    %v1102 = vld [vmem:[#allocation4 + $0x220] sm:$0xff]
    %v1103 = vld [vmem:[#allocation4 + $0x228] sm:$0xff]
    %v1104 = vld [vmem:[#allocation4 + $0x230] sm:$0xff]
    %v1105 = vld [vmem:[#allocation4 + $0x238] sm:$0xff]
    %v1106 = vld [vmem:[#allocation4 + $0x240] sm:$0xff]
    %v1107 = vld [vmem:[#allocation4 + $0x248] sm:$0xff]
    %v1108 = vld [vmem:[#allocation4 + $0x250] sm:$0xff]
    %v1109 = vld [vmem:[#allocation4 + $0x258] sm:$0xff]
    %v1110 = vld [vmem:[#allocation4 + $0x260] sm:$0xff]
    %v1111 = vld [vmem:[#allocation4 + $0x268] sm:$0xff]
    %v1112 = vld [vmem:[#allocation4 + $0x270] sm:$0xff]
    %v1113 = vld [vmem:[#allocation4 + $0x278] sm:$0xff]
    %v1114 = vld [vmem:[#allocation4 + $0x280] sm:$0xff]
    %v1115 = vld [vmem:[#allocation4 + $0x288] sm:$0xff]
    %v1116 = vld [vmem:[#allocation4 + $0x290] sm:$0xff]
    %v1117 = vld [vmem:[#allocation4 + $0x298] sm:$0xff]
    %v1118 = vld [vmem:[#allocation4 + $0x2a0] sm:$0xff]
    %v1119 = vld [vmem:[#allocation4 + $0x2a8] sm:$0xff]
    %v1120 = vld [vmem:[#allocation4 + $0x2b0] sm:$0xff]
    %v1121 = vld [vmem:[#allocation4 + $0x2b8] sm:$0xff]
    %v1122 = vld [vmem:[#allocation4 + $0x2c0] sm:$0xff]
    %v1123 = vld [vmem:[#allocation4 + $0x2c8] sm:$0xff]
    %v1124 = vld [vmem:[#allocation4 + $0x2d0] sm:$0xff]
    %v1125 = vld [vmem:[#allocation4 + $0x2d8] sm:$0xff]
    %v1126 = vld [vmem:[#allocation4 + $0x2e0] sm:$0xff]
    %v1127 = vld [vmem:[#allocation4 + $0x2e8] sm:$0xff]
    %v1128 = vld [vmem:[#allocation4 + $0x2f0] sm:$0xff]
    %v1129 = vld [vmem:[#allocation4 + $0x2f8] sm:$0xff]
    %v1130 = vld [vmem:[#allocation4 + $0x300] sm:$0xff]
    %v1131 = vld [vmem:[#allocation4 + $0x308] sm:$0xff]
    %v1132 = vld [vmem:[#allocation4 + $0x310] sm:$0xff]
    %v1133 = vld [vmem:[#allocation4 + $0x318] sm:$0xff]
    %v1134 = vld [vmem:[#allocation4 + $0x320] sm:$0xff]
    %v1135 = vld [vmem:[#allocation4 + $0x328] sm:$0xff]
    %v1136 = vld [vmem:[#allocation4 + $0x330] sm:$0xff]
    %v1137 = vld [vmem:[#allocation4 + $0x338] sm:$0xff]
    %v1138 = vld [vmem:[#allocation4 + $0x340] sm:$0xff]
    %v1139 = vld [vmem:[#allocation4 + $0x348] sm:$0xff]
    %v1140 = vld [vmem:[#allocation4 + $0x350] sm:$0xff]
    %v1141 = vld [vmem:[#allocation4 + $0x358] sm:$0xff]
    %v1142 = vld [vmem:[#allocation4 + $0x360] sm:$0xff]
    %v1143 = vld [vmem:[#allocation4 + $0x368] sm:$0xff]
    %v1144 = vld [vmem:[#allocation4 + $0x370] sm:$0xff]
    %v1145 = vld [vmem:[#allocation4 + $0x378] sm:$0xff]
    %v1146 = vld [vmem:[#allocation4 + $0x380] sm:$0xff]
    %v1147 = vld [vmem:[#allocation4 + $0x388] sm:$0xff]
    %v1148 = vld [vmem:[#allocation4 + $0x390] sm:$0xff]
    %v1149 = vld [vmem:[#allocation4 + $0x398] sm:$0xff]
    %v1150 = vld [vmem:[#allocation4 + $0x3a0] sm:$0xff]
    %v1151 = vld [vmem:[#allocation4 + $0x3a8] sm:$0xff]
    %v1152 = vld [vmem:[#allocation4 + $0x3b0] sm:$0xff]
    %v1153 = vld [vmem:[#allocation4 + $0x3b8] sm:$0xff]
    %v1154 = vld [vmem:[#allocation4 + $0x3c0] sm:$0xff]
    %v1155 = vld [vmem:[#allocation4 + $0x3c8] sm:$0xff]
    %v1156 = vld [vmem:[#allocation4 + $0x3d0] sm:$0xff]
    %v1157 = vld [vmem:[#allocation4 + $0x3d8] sm:$0xff]
    %v1158 = vld [vmem:[#allocation4 + $0x3e0] sm:$0xff]
    %v1159 = vld [vmem:[#allocation4 + $0x3e8] sm:$0xff]
    %v1160 = vld [vmem:[#allocation4 + $0x3f0] sm:$0xff]
    %v1161 = vld [vmem:[#allocation4 + $0x3f8] sm:$0xff]
    %v1162 = vld [vmem:[#allocation4 + $0x400] sm:$0xff]
    %v1163 = vld [vmem:[#allocation4 + $0x408] sm:$0xff]
    %v1164 = vld [vmem:[#allocation4 + $0x410] sm:$0xff]
    %v1165 = vld [vmem:[#allocation4 + $0x418] sm:$0xff]
    %v1166 = vld [vmem:[#allocation4 + $0x420] sm:$0xff]
    %v1167 = vld [vmem:[#allocation4 + $0x428] sm:$0xff]
    %v1168 = vld [vmem:[#allocation4 + $0x430] sm:$0xff]
    %v1169 = vld [vmem:[#allocation4 + $0x438] sm:$0xff]
    %v1170 = vld [vmem:[#allocation4 + $0x440] sm:$0xff]
    %v1171 = vld [vmem:[#allocation4 + $0x448] sm:$0xff]
    %v1172 = vld [vmem:[#allocation4 + $0x450] sm:$0xff]
    %v1173 = vld [vmem:[#allocation4 + $0x458] sm:$0xff]
    %v1174 = vld [vmem:[#allocation4 + $0x460] sm:$0xff]
    %v1175 = vld [vmem:[#allocation4 + $0x468] sm:$0xff]
    %v1176 = vld [vmem:[#allocation4 + $0x470] sm:$0xff]
    %v1177 = vld [vmem:[#allocation4 + $0x478] sm:$0xff]
    %v1178 = vld [vmem:[#allocation4 + $0x480] sm:$0xff]
    %v1179 = vld [vmem:[#allocation4 + $0x488] sm:$0xff]
    %v1180 = vld [vmem:[#allocation4 + $0x490] sm:$0xff]
    %v1181 = vld [vmem:[#allocation4 + $0x498] sm:$0xff]
    %v1182 = vld [vmem:[#allocation4 + $0x4a0] sm:$0xff]
    %v1183 = vld [vmem:[#allocation4 + $0x4a8] sm:$0xff]
    %v1184 = vld [vmem:[#allocation4 + $0x4b0] sm:$0xff]
    %v1185 = vld [vmem:[#allocation4 + $0x4b8] sm:$0xff]
    %v1186 = vld [vmem:[#allocation4 + $0x4c0] sm:$0xff]
    %v1187 = vld [vmem:[#allocation4 + $0x4c8] sm:$0xff]
    %v1188 = vld [vmem:[#allocation4 + $0x4d0] sm:$0xff]
    %v1189 = vld [vmem:[#allocation4 + $0x4d8] sm:$0xff]
    %v1190 = vld [vmem:[#allocation4 + $0x4e0] sm:$0xff]
    %v1191 = vld [vmem:[#allocation4 + $0x4e8] sm:$0xff]
    %v1192 = vld [vmem:[#allocation4 + $0x4f0] sm:$0xff]
    %v1193 = vld [vmem:[#allocation4 + $0x4f8] sm:$0xff]
    %v1194 = vld [vmem:[%s6] sm:$0x3]
    %v1196 = vlaneseq
    %v1197 = vshrl.u32 %v1196, 7
    %v1198 = vsub.s32 0, %v1197
    %v1199 = vrot.slane %v1194, %v1198
    %v1200 = vlaneseq
    %v1201 = vshrl.u32 %v1200, 7
    %v1202 = vsub.s32 1, %v1201
    %v1203 = vrot.slane %v1194, %v1202
    %1206 = vmatprep.subr.mxu0 %v1065
    %1207 = vmatpush1.msra.mxu0 %v1064
    %1208 = vmatprep.subr.mxu0 %v1063
    %1209 = vmatpush1.msra.mxu0 %v1062
    %1210 = vmatprep.subr.mxu0 %v1061
    %1211 = vmatpush1.msra.mxu0 %v1060
    %1212 = vmatprep.subr.mxu0 %v1059
    %1213 = vmatpush1.msra.mxu0 %v1058
    %1214 = vmatprep.subr.mxu0 %v1057
    %1215 = vmatpush1.msra.mxu0 %v1056
    %1216 = vmatprep.subr.mxu0 %v1055
    %1217 = vmatpush1.msra.mxu0 %v1054
    %1218 = vmatprep.subr.mxu0 %v1053
    %1219 = vmatpush1.msra.mxu0 %v1052
    %1220 = vmatprep.subr.mxu0 %v1051
    %1221 = vmatpush1.msra.mxu0 %v1050
    %1222 = vmatprep.subr.mxu0 %v1049
    %1223 = vmatpush1.msra.mxu0 %v1048
    %1224 = vmatprep.subr.mxu0 %v1047
    %1225 = vmatpush1.msra.mxu0 %v1046
    %1226 = vmatprep.subr.mxu0 %v1045
    %1227 = vmatpush1.msra.mxu0 %v1044
    %1228 = vmatprep.subr.mxu0 %v1043
    %1229 = vmatpush1.msra.mxu0 %v1042
    %1230 = vmatprep.subr.mxu0 %v1041
    %1231 = vmatpush1.msra.mxu0 %v1040
    %1232 = vmatprep.subr.mxu0 %v1039
    %1233 = vmatpush1.msra.mxu0 %v1038
    %1234 = vmatprep.subr.mxu0 %v1037
    %1235 = vmatpush1.msra.mxu0 %v1036
    %1236 = vmatprep.subr.mxu0 %v1035
    %1237 = vmatpush1.msra.mxu0 %v1034
    %1238 = vmatprep.subr.mxu0 %v1097
    %1239 = vmatpush2.msra.mxu0 %v1096
    %1240 = vmatprep.subr.mxu0 %v1095
    %1241 = vmatpush2.msra.mxu0 %v1094
    %1242 = vmatprep.subr.mxu0 %v1093
    %1243 = vmatpush2.msra.mxu0 %v1092
    %1244 = vmatprep.subr.mxu0 %v1091
    %1245 = vmatpush2.msra.mxu0 %v1090
    %1246 = vmatprep.subr.mxu0 %v1089
    %1247 = vmatpush2.msra.mxu0 %v1088
    %1248 = vmatprep.subr.mxu0 %v1087
    %1249 = vmatpush2.msra.mxu0 %v1086
    %1250 = vmatprep.subr.mxu0 %v1085
    %1251 = vmatpush2.msra.mxu0 %v1084
    %1252 = vmatprep.subr.mxu0 %v1083
    %1253 = vmatpush2.msra.mxu0 %v1082
    %1254 = vmatprep.subr.mxu0 %v1081
    %1255 = vmatpush2.msra.mxu0 %v1080
    %1256 = vmatprep.subr.mxu0 %v1079
    %1257 = vmatpush2.msra.mxu0 %v1078
    %1258 = vmatprep.subr.mxu0 %v1077
    %1259 = vmatpush2.msra.mxu0 %v1076
    %1260 = vmatprep.subr.mxu0 %v1075
    %1261 = vmatpush2.msra.mxu0 %v1074
    %1262 = vmatprep.subr.mxu0 %v1073
    %1263 = vmatpush2.msra.mxu0 %v1072
    %1264 = vmatprep.subr.mxu0 %v1071
    %1265 = vmatpush2.msra.mxu0 %v1070
    %1266 = vmatprep.subr.mxu0 %v1069
    %1267 = vmatpush2.msra.mxu0 %v1068
    %1268 = vmatprep.subr.mxu0 %v1067
    %1269 = vmatpush2.msra.mxu0 %v1066
    %1270 = vmatprep.mubr.f32.mxu0 %v1026
    %1271 = vmatmul.mubr.f32.gmra.mxu0 %v1024
    %v1272 = vpop.f32.mrf.mxu0
    %v1273 = vadd.f32 %v1199, %v1272
    %v1274 = vpop.f32.mrf.mxu0
    %v1275 = vadd.f32 %v1203, %v1274
    %1276 = vmatprep.mubr.f32.mxu0 %v1027
    %1277 = vmatmul.mubr.f32.gmra.mxu0 %v1025
    %v1278 = vpop.f32.mrf.mxu0
    %v1279 = vadd.f32 %v1199, %v1278
    %v1280 = vpop.f32.mrf.mxu0
    %v1281 = vadd.f32 %v1203, %v1280
    %1282 = vdwg.mxu0
    %1283 = vmatprep.subr.mxu0 %v1129
    %1284 = vmatpush1.msra.mxu0 %v1128
    %1285 = vmatprep.subr.mxu0 %v1127
    %1286 = vmatpush1.msra.mxu0 %v1126
    %1287 = vmatprep.subr.mxu0 %v1125
    %1288 = vmatpush1.msra.mxu0 %v1124
    %1289 = vmatprep.subr.mxu0 %v1123
    %1290 = vmatpush1.msra.mxu0 %v1122
    %1291 = vmatprep.subr.mxu0 %v1121
    %1292 = vmatpush1.msra.mxu0 %v1120
    %1293 = vmatprep.subr.mxu0 %v1119
    %1294 = vmatpush1.msra.mxu0 %v1118
    %1295 = vmatprep.subr.mxu0 %v1117
    %1296 = vmatpush1.msra.mxu0 %v1116
    %1297 = vmatprep.subr.mxu0 %v1115
    %1298 = vmatpush1.msra.mxu0 %v1114
    %1299 = vmatprep.subr.mxu0 %v1113
    %1300 = vmatpush1.msra.mxu0 %v1112
    %1301 = vmatprep.subr.mxu0 %v1111
    %1302 = vmatpush1.msra.mxu0 %v1110
    %1303 = vmatprep.subr.mxu0 %v1109
    %1304 = vmatpush1.msra.mxu0 %v1108
    %1305 = vmatprep.subr.mxu0 %v1107
    %1306 = vmatpush1.msra.mxu0 %v1106
    %1307 = vmatprep.subr.mxu0 %v1105
    %1308 = vmatpush1.msra.mxu0 %v1104
    %1309 = vmatprep.subr.mxu0 %v1103
    %1310 = vmatpush1.msra.mxu0 %v1102
    %1311 = vmatprep.subr.mxu0 %v1101
    %1312 = vmatpush1.msra.mxu0 %v1100
    %1313 = vmatprep.subr.mxu0 %v1099
    %1314 = vmatpush1.msra.mxu0 %v1098
    %1315 = vmatprep.subr.mxu0 %v1161
    %1316 = vmatpush2.msra.mxu0 %v1160
    %1317 = vmatprep.subr.mxu0 %v1159
    %1318 = vmatpush2.msra.mxu0 %v1158
    %1319 = vmatprep.subr.mxu0 %v1157
    %1320 = vmatpush2.msra.mxu0 %v1156
    %1321 = vmatprep.subr.mxu0 %v1155
    %1322 = vmatpush2.msra.mxu0 %v1154
    %1323 = vmatprep.subr.mxu0 %v1153
    %1324 = vmatpush2.msra.mxu0 %v1152
    %1325 = vmatprep.subr.mxu0 %v1151
    %1326 = vmatpush2.msra.mxu0 %v1150
    %1327 = vmatprep.subr.mxu0 %v1149
    %1328 = vmatpush2.msra.mxu0 %v1148
    %1329 = vmatprep.subr.mxu0 %v1147
    %1330 = vmatpush2.msra.mxu0 %v1146
    %1331 = vmatprep.subr.mxu0 %v1145
    %1332 = vmatpush2.msra.mxu0 %v1144
    %1333 = vmatprep.subr.mxu0 %v1143
    %1334 = vmatpush2.msra.mxu0 %v1142
    %1335 = vmatprep.subr.mxu0 %v1141
    %1336 = vmatpush2.msra.mxu0 %v1140
    %1337 = vmatprep.subr.mxu0 %v1139
    %1338 = vmatpush2.msra.mxu0 %v1138
    %1339 = vmatprep.subr.mxu0 %v1137
    %1340 = vmatpush2.msra.mxu0 %v1136
    %1341 = vmatprep.subr.mxu0 %v1135
    %1342 = vmatpush2.msra.mxu0 %v1134
    %1343 = vmatprep.subr.mxu0 %v1133
    %1344 = vmatpush2.msra.mxu0 %v1132
    %1345 = vmatprep.subr.mxu0 %v1131
    %1346 = vmatpush2.msra.mxu0 %v1130
    %1347 = vmatprep.mubr.f32.mxu0 %v1030
    %1348 = vmatmul.mubr.f32.gmra.mxu0 %v1028
    %v1349 = vpop.f32.mrf.mxu0
    %v1350 = vadd.f32 %v1273, %v1349
    %v1351 = vpop.f32.mrf.mxu0
    %v1352 = vadd.f32 %v1275, %v1351
    %1353 = vmatprep.mubr.f32.mxu0 %v1031
    %1354 = vmatmul.mubr.f32.gmra.mxu0 %v1029
    %v1355 = vpop.f32.mrf.mxu0
    %v1356 = vadd.f32 %v1279, %v1355
    %v1357 = vpop.f32.mrf.mxu0
    %v1358 = vadd.f32 %v1281, %v1357
    %1359 = vdwg.mxu0
    %1360 = vmatprep.subr.mxu0 %v1193
    %1361 = vmatpush1.msra.mxu0 %v1192
    %1362 = vmatprep.subr.mxu0 %v1191
    %1363 = vmatpush1.msra.mxu0 %v1190
    %1364 = vmatprep.subr.mxu0 %v1189
    %1365 = vmatpush1.msra.mxu0 %v1188
    %1366 = vmatprep.subr.mxu0 %v1187
    %1367 = vmatpush1.msra.mxu0 %v1186
    %1368 = vmatprep.subr.mxu0 %v1185
    %1369 = vmatpush1.msra.mxu0 %v1184
    %1370 = vmatprep.subr.mxu0 %v1183
    %1371 = vmatpush1.msra.mxu0 %v1182
    %1372 = vmatprep.subr.mxu0 %v1181
    %1373 = vmatpush1.msra.mxu0 %v1180
    %1374 = vmatprep.subr.mxu0 %v1179
    %1375 = vmatpush1.msra.mxu0 %v1178
    %1376 = vmatprep.subr.mxu0 %v1177
    %1377 = vmatpush1.msra.mxu0 %v1176
    %1378 = vmatprep.subr.mxu0 %v1175
    %1379 = vmatpush1.msra.mxu0 %v1174
    %1380 = vmatprep.subr.mxu0 %v1173
    %1381 = vmatpush1.msra.mxu0 %v1172
    %1382 = vmatprep.subr.mxu0 %v1171
    %1383 = vmatpush1.msra.mxu0 %v1170
    %1384 = vmatprep.subr.mxu0 %v1169
    %1385 = vmatpush1.msra.mxu0 %v1168
    %1386 = vmatprep.subr.mxu0 %v1167
    %1387 = vmatpush1.msra.mxu0 %v1166
    %1388 = vmatprep.subr.mxu0 %v1165
    %1389 = vmatpush1.msra.mxu0 %v1164
    %1390 = vmatprep.subr.mxu0 %v1163
    %1391 = vmatpush1.msra.mxu0 %v1162
    %1392 = vmatprep.subr.mxu0 0.0
    %1393 = vmatpush2.msra.mxu0 0.0
    %1394 = vmatprep.subr.mxu0 0.0
    %1395 = vmatpush2.msra.mxu0 0.0
    %1396 = vmatprep.subr.mxu0 0.0
    %1397 = vmatpush2.msra.mxu0 0.0
    %1398 = vmatprep.subr.mxu0 0.0
    %1399 = vmatpush2.msra.mxu0 0.0
    %1400 = vmatprep.subr.mxu0 0.0
    %1401 = vmatpush2.msra.mxu0 0.0
    %1402 = vmatprep.subr.mxu0 0.0
    %1403 = vmatpush2.msra.mxu0 0.0
    %1404 = vmatprep.subr.mxu0 0.0
    %1405 = vmatpush2.msra.mxu0 0.0
    %1406 = vmatprep.subr.mxu0 0.0
    %1407 = vmatpush2.msra.mxu0 0.0
    %1408 = vmatprep.subr.mxu0 0.0
    %1409 = vmatpush2.msra.mxu0 0.0
    %1410 = vmatprep.subr.mxu0 0.0
    %1411 = vmatpush2.msra.mxu0 0.0
    %1412 = vmatprep.subr.mxu0 0.0
    %1413 = vmatpush2.msra.mxu0 0.0
    %1414 = vmatprep.subr.mxu0 0.0
    %1415 = vmatpush2.msra.mxu0 0.0
    %1416 = vmatprep.subr.mxu0 0.0
    %1417 = vmatpush2.msra.mxu0 0.0
    %1418 = vmatprep.subr.mxu0 0.0
    %1419 = vmatpush2.msra.mxu0 0.0
    %1420 = vmatprep.subr.mxu0 0.0
    %1421 = vmatpush2.msra.mxu0 0.0
    %1422 = vmatprep.subr.mxu0 0.0
    %1423 = vmatpush2.msra.mxu0 0.0
    %1424 = vmatprep.mubr.f32.mxu0 0.0
    %1425 = vmatmul.mubr.f32.gmra.mxu0 %v1032
    %v1426 = vpop.f32.mrf.mxu0
    %v1427 = vadd.f32 %v1350, %v1426
    %v1428 = vpop.f32.mrf.mxu0
    %v1429 = vadd.f32 %v1352, %v1428
    %1430 = vmatprep.mubr.f32.mxu0 0.0
    %1431 = vmatmul.mubr.f32.gmra.mxu0 %v1033
    %v1432 = vpop.f32.mrf.mxu0
    %v1433 = vadd.f32 %v1356, %v1432
    %v1434 = vpop.f32.mrf.mxu0
    %v1435 = vadd.f32 %v1358, %v1434
    %1436 = vdwg.mxu0
    %v1437 = vmax.f32 %v1427, 0.0
    %v1438 = vmax.f32 %v1429, 0.0
    %v1439 = vmax.f32 %v1433, 0.0
    %v1440 = vmax.f32 %v1435, 0.0
    %v1441 = vmax.f32 %v1437, %v1438
    %v1442 = vmax.f32 %v1439, %v1440
    %v1443 = vld [vmem:[%s7] sm:$0xff]
    %v1444 = vld [vmem:[%s7 + $0x8] sm:$0xff]
    %v1445 = vld [vmem:[%s7 + $0x10] sm:$0xff]
    %v1446 = vld [vmem:[%s7 + $0x18] sm:$0xff]
    %vm1447 = vcmask 130048
    %v1449 = vsel %vm1447, %v1443, 0
    %v1452 = vsel %vm1447, %v1444, 0
    %v1455 = vsel %vm1447, %v1445, 0
    %v1458 = vsel %vm1447, %v1446, 0
    %1460 = vmatprep.subr.mxu0 0.0
    %1461 = vmatpush1.msra.mxu0 0.0
    %1462 = vmatprep.subr.mxu0 0.0
    %1463 = vmatpush1.msra.mxu0 0.0
    %1464 = vmatprep.subr.mxu0 0.0
    %1465 = vmatpush1.msra.mxu0 0.0
    %1466 = vmatprep.subr.mxu0 0.0
    %1467 = vmatpush1.msra.mxu0 0.0
    %1468 = vmatprep.subr.mxu0 0.0
    %1469 = vmatpush1.msra.mxu0 0.0
    %1470 = vmatprep.subr.mxu0 0.0
    %1471 = vmatpush1.msra.mxu0 0.0
    %1472 = vmatprep.subr.mxu0 0.0
    %1473 = vmatpush1.msra.mxu0 0.0
    %1474 = vmatprep.subr.mxu0 0.0
    %1475 = vmatpush1.msra.mxu0 0.0
    %1476 = vmatprep.subr.mxu0 0.0
    %1477 = vmatpush1.msra.mxu0 0.0
    %1478 = vmatprep.subr.mxu0 0.0
    %1479 = vmatpush1.msra.mxu0 0.0
    %1480 = vmatprep.subr.mxu0 0.0
    %1481 = vmatpush1.msra.mxu0 0.0
    %1482 = vmatprep.subr.mxu0 0.0
    %1483 = vmatpush1.msra.mxu0 0.0
    %1484 = vmatprep.subr.mxu0 0.0
    %1485 = vmatpush1.msra.mxu0 0.0
    %1486 = vmatprep.subr.mxu0 0.0
    %1487 = vmatpush1.msra.mxu0 0.0
    %1488 = vmatprep.subr.mxu0 0.0
    %1489 = vmatpush1.msra.mxu0 %v1442
    %1490 = vmatprep.subr.mxu0 0.0
    %1491 = vmatpush1.msra.mxu0 %v1441
    %1492 = vmatprep.subr.mxu0 0.0
    %1493 = vmatpush2.msra.mxu0 0.0
    %1494 = vmatprep.subr.mxu0 0.0
    %1495 = vmatpush2.msra.mxu0 0.0
    %1496 = vmatprep.subr.mxu0 0.0
    %1497 = vmatpush2.msra.mxu0 0.0
    %1498 = vmatprep.subr.mxu0 0.0
    %1499 = vmatpush2.msra.mxu0 0.0
    %1500 = vmatprep.subr.mxu0 0.0
    %1501 = vmatpush2.msra.mxu0 0.0
    %1502 = vmatprep.subr.mxu0 0.0
    %1503 = vmatpush2.msra.mxu0 0.0
    %1504 = vmatprep.subr.mxu0 0.0
    %1505 = vmatpush2.msra.mxu0 0.0
    %1506 = vmatprep.subr.mxu0 0.0
    %1507 = vmatpush2.msra.mxu0 0.0
    %1508 = vmatprep.subr.mxu0 0.0
    %1509 = vmatpush2.msra.mxu0 0.0
    %1510 = vmatprep.subr.mxu0 0.0
    %1511 = vmatpush2.msra.mxu0 0.0
    %1512 = vmatprep.subr.mxu0 0.0
    %1513 = vmatpush2.msra.mxu0 0.0
    %1514 = vmatprep.subr.mxu0 0.0
    %1515 = vmatpush2.msra.mxu0 0.0
    %1516 = vmatprep.subr.mxu0 0.0
    %1517 = vmatpush2.msra.mxu0 0.0
    %1518 = vmatprep.subr.mxu0 0.0
    %1519 = vmatpush2.msra.mxu0 0.0
    %1520 = vmatprep.subr.mxu0 0.0
    %1521 = vmatpush2.msra.mxu0 0.0
    %1522 = vmatprep.subr.mxu0 0.0
    %1523 = vmatpush2.msra.mxu0 0.0
    %1524 = vmatprep.mubr.f32.mxu0 0.0
    %1525 = vmatmul.mubr.f32.gmra.mxu0 %v1449
    %v1526 = vpop.f32.mrf.mxu0
    %v1527 = vadd.f32 0.0, %v1526
    %v1528 = vpop.f32.mrf.mxu0
    %1529 = vmatprep.mubr.f32.mxu0 0.0
    %1530 = vmatmul.mubr.f32.gmra.mxu0 %v1452
    %v1531 = vpop.f32.mrf.mxu0
    %v1532 = vadd.f32 0.0, %v1531
    %v1533 = vpop.f32.mrf.mxu0
    %1534 = vmatprep.mubr.f32.mxu0 0.0
    %1535 = vmatmul.mubr.f32.gmra.mxu0 %v1455
    %v1536 = vpop.f32.mrf.mxu0
    %v1537 = vadd.f32 0.0, %v1536
    %v1538 = vpop.f32.mrf.mxu0
    %1539 = vmatprep.mubr.f32.mxu0 0.0
    %1540 = vmatmul.mubr.f32.gmra.mxu0 %v1458
    %v1541 = vpop.f32.mrf.mxu0
    %v1542 = vadd.f32 0.0, %v1541
    %v1543 = vpop.f32.mrf.mxu0
    %1544 = vdwg.mxu0
    %v1545 = vld [vmem:[%s8] sm:$0xff]
    %v1546 = vld [vmem:[%s8 + $0x8] sm:$0xff]
    %v1547 = vld [vmem:[%s8 + $0x10] sm:$0xff]
    %v1548 = vld [vmem:[%s8 + $0x18] sm:$0xff]
    %v1550 = vsel %vm1447, %v1545, 0
    %v1553 = vsel %vm1447, %v1546, 0
    %v1556 = vsel %vm1447, %v1547, 0
    %v1559 = vsel %vm1447, %v1548, 0
    %1561 = vmatprep.subr.mxu0 0.0
    %1562 = vmatpush1.msra.mxu0 0.0
    %1563 = vmatprep.subr.mxu0 0.0
    %1564 = vmatpush1.msra.mxu0 0.0
    %1565 = vmatprep.subr.mxu0 0.0
    %1566 = vmatpush1.msra.mxu0 0.0
    %1567 = vmatprep.subr.mxu0 0.0
    %1568 = vmatpush1.msra.mxu0 0.0
    %1569 = vmatprep.subr.mxu0 0.0
    %1570 = vmatpush1.msra.mxu0 0.0
    %1571 = vmatprep.subr.mxu0 0.0
    %1572 = vmatpush1.msra.mxu0 0.0
    %1573 = vmatprep.subr.mxu0 0.0
    %1574 = vmatpush1.msra.mxu0 0.0
    %1575 = vmatprep.subr.mxu0 0.0
    %1576 = vmatpush1.msra.mxu0 0.0
    %1577 = vmatprep.subr.mxu0 0.0
    %1578 = vmatpush1.msra.mxu0 0.0
    %1579 = vmatprep.subr.mxu0 0.0
    %1580 = vmatpush1.msra.mxu0 0.0
    %1581 = vmatprep.subr.mxu0 0.0
    %1582 = vmatpush1.msra.mxu0 0.0
    %1583 = vmatprep.subr.mxu0 0.0
    %1584 = vmatpush1.msra.mxu0 0.0
    %1585 = vmatprep.subr.mxu0 0.0
    %1586 = vmatpush1.msra.mxu0 0.0
    %1587 = vmatprep.subr.mxu0 0.0
    %1588 = vmatpush1.msra.mxu0 0.0
    %1589 = vmatprep.subr.mxu0 0.0
    %1590 = vmatpush1.msra.mxu0 %v1442
    %1591 = vmatprep.subr.mxu0 0.0
    %1592 = vmatpush1.msra.mxu0 %v1441
    %1593 = vmatprep.subr.mxu0 0.0
    %1594 = vmatpush2.msra.mxu0 0.0
    %1595 = vmatprep.subr.mxu0 0.0
    %1596 = vmatpush2.msra.mxu0 0.0
    %1597 = vmatprep.subr.mxu0 0.0
    %1598 = vmatpush2.msra.mxu0 0.0
    %1599 = vmatprep.subr.mxu0 0.0
    %1600 = vmatpush2.msra.mxu0 0.0
    %1601 = vmatprep.subr.mxu0 0.0
    %1602 = vmatpush2.msra.mxu0 0.0
    %1603 = vmatprep.subr.mxu0 0.0
    %1604 = vmatpush2.msra.mxu0 0.0
    %1605 = vmatprep.subr.mxu0 0.0
    %1606 = vmatpush2.msra.mxu0 0.0
    %1607 = vmatprep.subr.mxu0 0.0
    %1608 = vmatpush2.msra.mxu0 0.0
    %1609 = vmatprep.subr.mxu0 0.0
    %1610 = vmatpush2.msra.mxu0 0.0
    %1611 = vmatprep.subr.mxu0 0.0
    %1612 = vmatpush2.msra.mxu0 0.0
    %1613 = vmatprep.subr.mxu0 0.0
    %1614 = vmatpush2.msra.mxu0 0.0
    %1615 = vmatprep.subr.mxu0 0.0
    %1616 = vmatpush2.msra.mxu0 0.0
    %1617 = vmatprep.subr.mxu0 0.0
    %1618 = vmatpush2.msra.mxu0 0.0
    %1619 = vmatprep.subr.mxu0 0.0
    %1620 = vmatpush2.msra.mxu0 0.0
    %1621 = vmatprep.subr.mxu0 0.0
    %1622 = vmatpush2.msra.mxu0 0.0
    %1623 = vmatprep.subr.mxu0 0.0
    %1624 = vmatpush2.msra.mxu0 0.0
    %1625 = vmatprep.mubr.f32.mxu0 0.0
    %1626 = vmatmul.mubr.f32.gmra.mxu0 %v1550
    %v1627 = vpop.f32.mrf.mxu0
    %v1628 = vadd.f32 0.0, %v1627
    %v1629 = vpop.f32.mrf.mxu0
    %1630 = vmatprep.mubr.f32.mxu0 0.0
    %1631 = vmatmul.mubr.f32.gmra.mxu0 %v1553
    %v1632 = vpop.f32.mrf.mxu0
    %v1633 = vadd.f32 0.0, %v1632
    %v1634 = vpop.f32.mrf.mxu0
    %1635 = vmatprep.mubr.f32.mxu0 0.0
    %1636 = vmatmul.mubr.f32.gmra.mxu0 %v1556
    %v1637 = vpop.f32.mrf.mxu0
    %v1638 = vadd.f32 0.0, %v1637
    %v1639 = vpop.f32.mrf.mxu0
    %1640 = vmatprep.mubr.f32.mxu0 0.0
    %1641 = vmatmul.mubr.f32.gmra.mxu0 %v1559
    %v1642 = vpop.f32.mrf.mxu0
    %v1643 = vadd.f32 0.0, %v1642
    %v1644 = vpop.f32.mrf.mxu0
    %1645 = vdwg.mxu0
    %v1646 = vmax.f32 %v1527, %v1628
    %v1647 = vmax.f32 %v1532, %v1633
    %v1648 = vmax.f32 %v1537, %v1638
    %v1649 = vmax.f32 %v1542, %v1643
    %v1650 = vld [vmem:[#allocation6] sm:$0xff]
    %v1651 = vld [vmem:[#allocation6 + $0x8] sm:$0xff]
    %v1652 = vld [vmem:[#allocation6 + $0x10] sm:$0xff]
    %v1653 = vld [vmem:[#allocation6 + $0x18] sm:$0xff]
    %v1654 = vld [vmem:[#allocation6 + $0x20] sm:$0xff]
    %v1655 = vld [vmem:[#allocation6 + $0x28] sm:$0xff]
    %v1656 = vld [vmem:[#allocation6 + $0x30] sm:$0xff]
    %v1657 = vld [vmem:[#allocation6 + $0x38] sm:$0xff]
    %v1658 = vld [vmem:[#allocation6 + $0x40] sm:$0xff]
    %v1659 = vld [vmem:[#allocation6 + $0x48] sm:$0xff]
    %v1660 = vld [vmem:[#allocation6 + $0x50] sm:$0xff]
    %v1661 = vld [vmem:[#allocation6 + $0x58] sm:$0xff]
    %v1662 = vld [vmem:[#allocation6 + $0x60] sm:$0xff]
    %v1663 = vld [vmem:[#allocation6 + $0x68] sm:$0xff]
    %v1664 = vld [vmem:[#allocation6 + $0x70] sm:$0xff]
    %v1665 = vld [vmem:[#allocation6 + $0x78] sm:$0xff]
    %v1666 = vld [vmem:[#allocation6 + $0x80] sm:$0xff]
    %v1667 = vld [vmem:[#allocation6 + $0x88] sm:$0xff]
    %v1668 = vld [vmem:[#allocation6 + $0x90] sm:$0xff]
    %v1669 = vld [vmem:[#allocation6 + $0x98] sm:$0xff]
    %v1670 = vld [vmem:[#allocation6 + $0xa0] sm:$0xff]
    %v1671 = vld [vmem:[#allocation6 + $0xa8] sm:$0xff]
    %v1672 = vld [vmem:[#allocation6 + $0xb0] sm:$0xff]
    %v1673 = vld [vmem:[#allocation6 + $0xb8] sm:$0xff]
    %v1674 = vld [vmem:[#allocation6 + $0xc0] sm:$0xff]
    %v1675 = vld [vmem:[#allocation6 + $0xc8] sm:$0xff]
    %v1676 = vld [vmem:[#allocation6 + $0xd0] sm:$0xff]
    %v1677 = vld [vmem:[#allocation6 + $0xd8] sm:$0xff]
    %v1678 = vld [vmem:[#allocation6 + $0xe0] sm:$0xff]
    %v1679 = vld [vmem:[#allocation6 + $0xe8] sm:$0xff]
    %v1680 = vld [vmem:[#allocation6 + $0xf0] sm:$0xff]
    %v1681 = vld [vmem:[#allocation6 + $0xf8] sm:$0xff]
    %v1682 = vld [vmem:[#allocation6 + $0x100] sm:$0xff]
    %v1683 = vld [vmem:[#allocation6 + $0x108] sm:$0xff]
    %v1684 = vld [vmem:[#allocation6 + $0x110] sm:$0xff]
    %v1685 = vld [vmem:[#allocation6 + $0x118] sm:$0xff]
    %v1686 = vld [vmem:[#allocation6 + $0x120] sm:$0xff]
    %v1687 = vld [vmem:[#allocation6 + $0x128] sm:$0xff]
    %v1688 = vld [vmem:[#allocation6 + $0x130] sm:$0xff]
    %v1689 = vld [vmem:[#allocation6 + $0x138] sm:$0xff]
    %v1690 = vld [vmem:[#allocation6 + $0x140] sm:$0xff]
    %v1691 = vld [vmem:[#allocation6 + $0x148] sm:$0xff]
    %v1692 = vld [vmem:[#allocation6 + $0x150] sm:$0xff]
    %v1693 = vld [vmem:[#allocation6 + $0x158] sm:$0xff]
    %v1694 = vld [vmem:[#allocation6 + $0x160] sm:$0xff]
    %v1695 = vld [vmem:[#allocation6 + $0x168] sm:$0xff]
    %v1696 = vld [vmem:[#allocation6 + $0x170] sm:$0xff]
    %v1697 = vld [vmem:[#allocation6 + $0x178] sm:$0xff]
    %v1698 = vld [vmem:[#allocation6 + $0x180] sm:$0xff]
    %v1699 = vld [vmem:[#allocation6 + $0x188] sm:$0xff]
    %v1700 = vld [vmem:[#allocation6 + $0x190] sm:$0xff]
    %v1701 = vld [vmem:[#allocation6 + $0x198] sm:$0xff]
    %v1702 = vld [vmem:[#allocation6 + $0x1a0] sm:$0xff]
    %v1703 = vld [vmem:[#allocation6 + $0x1a8] sm:$0xff]
    %v1704 = vld [vmem:[#allocation6 + $0x1b0] sm:$0xff]
    %v1705 = vld [vmem:[#allocation6 + $0x1b8] sm:$0xff]
    %v1706 = vld [vmem:[#allocation6 + $0x1c0] sm:$0xff]
    %v1707 = vld [vmem:[#allocation6 + $0x1c8] sm:$0xff]
    %v1708 = vld [vmem:[#allocation6 + $0x1d0] sm:$0xff]
    %v1709 = vld [vmem:[#allocation6 + $0x1d8] sm:$0xff]
    %v1710 = vld [vmem:[#allocation6 + $0x1e0] sm:$0xff]
    %v1711 = vld [vmem:[#allocation6 + $0x1e8] sm:$0xff]
    %v1712 = vld [vmem:[#allocation6 + $0x1f0] sm:$0xff]
    %v1713 = vld [vmem:[#allocation6 + $0x1f8] sm:$0xff]
    %v1714 = vld [vmem:[%s10] sm:$0x1]
    %v1716 = vlaneseq
    %v1717 = vshrl.u32 %v1716, 7
    %v1718 = vsub.s32 0, %v1717
    %v1719 = vrot.slane %v1714, %v1718
    %1721 = vmatprep.subr.mxu0 0.0
    %1722 = vmatpush1.msra.mxu0 %v1665
    %1723 = vmatprep.subr.mxu0 0.0
    %1724 = vmatpush1.msra.mxu0 %v1664
    %1725 = vmatprep.subr.mxu0 0.0
    %1726 = vmatpush1.msra.mxu0 %v1663
    %1727 = vmatprep.subr.mxu0 0.0
    %1728 = vmatpush1.msra.mxu0 %v1662
    %1729 = vmatprep.subr.mxu0 0.0
    %1730 = vmatpush1.msra.mxu0 %v1661
    %1731 = vmatprep.subr.mxu0 0.0
    %1732 = vmatpush1.msra.mxu0 %v1660
    %1733 = vmatprep.subr.mxu0 0.0
    %1734 = vmatpush1.msra.mxu0 %v1659
    %1735 = vmatprep.subr.mxu0 0.0
    %1736 = vmatpush1.msra.mxu0 %v1658
    %1737 = vmatprep.subr.mxu0 0.0
    %1738 = vmatpush1.msra.mxu0 %v1657
    %1739 = vmatprep.subr.mxu0 0.0
    %1740 = vmatpush1.msra.mxu0 %v1656
    %1741 = vmatprep.subr.mxu0 0.0
    %1742 = vmatpush1.msra.mxu0 %v1655
    %1743 = vmatprep.subr.mxu0 0.0
    %1744 = vmatpush1.msra.mxu0 %v1654
    %1745 = vmatprep.subr.mxu0 0.0
    %1746 = vmatpush1.msra.mxu0 %v1653
    %1747 = vmatprep.subr.mxu0 0.0
    %1748 = vmatpush1.msra.mxu0 %v1652
    %1749 = vmatprep.subr.mxu0 0.0
    %1750 = vmatpush1.msra.mxu0 %v1651
    %1751 = vmatprep.subr.mxu0 0.0
    %1752 = vmatpush1.msra.mxu0 %v1650
    %1753 = vmatprep.subr.mxu0 0.0
    %1754 = vmatpush2.msra.mxu0 %v1681
    %1755 = vmatprep.subr.mxu0 0.0
    %1756 = vmatpush2.msra.mxu0 %v1680
    %1757 = vmatprep.subr.mxu0 0.0
    %1758 = vmatpush2.msra.mxu0 %v1679
    %1759 = vmatprep.subr.mxu0 0.0
    %1760 = vmatpush2.msra.mxu0 %v1678
    %1761 = vmatprep.subr.mxu0 0.0
    %1762 = vmatpush2.msra.mxu0 %v1677
    %1763 = vmatprep.subr.mxu0 0.0
    %1764 = vmatpush2.msra.mxu0 %v1676
    %1765 = vmatprep.subr.mxu0 0.0
    %1766 = vmatpush2.msra.mxu0 %v1675
    %1767 = vmatprep.subr.mxu0 0.0
    %1768 = vmatpush2.msra.mxu0 %v1674
    %1769 = vmatprep.subr.mxu0 0.0
    %1770 = vmatpush2.msra.mxu0 %v1673
    %1771 = vmatprep.subr.mxu0 0.0
    %1772 = vmatpush2.msra.mxu0 %v1672
    %1773 = vmatprep.subr.mxu0 0.0
    %1774 = vmatpush2.msra.mxu0 %v1671
    %1775 = vmatprep.subr.mxu0 0.0
    %1776 = vmatpush2.msra.mxu0 %v1670
    %1777 = vmatprep.subr.mxu0 0.0
    %1778 = vmatpush2.msra.mxu0 %v1669
    %1779 = vmatprep.subr.mxu0 0.0
    %1780 = vmatpush2.msra.mxu0 %v1668
    %1781 = vmatprep.subr.mxu0 0.0
    %1782 = vmatpush2.msra.mxu0 %v1667
    %1783 = vmatprep.subr.mxu0 0.0
    %1784 = vmatpush2.msra.mxu0 %v1666
    %1785 = vmatprep.mubr.f32.mxu0 %v1647
    %1786 = vmatmul.mubr.f32.gmra.mxu0 %v1646
    %v1787 = vpop.f32.mrf.mxu0
    %v1788 = vadd.f32 %v1719, %v1787
    %v1789 = vpop.f32.mrf.mxu0
    %1790 = vdwg.mxu0
    %1791 = vmatprep.subr.mxu0 0.0
    %1792 = vmatpush1.msra.mxu0 %v1697
    %1793 = vmatprep.subr.mxu0 0.0
    %1794 = vmatpush1.msra.mxu0 %v1696
    %1795 = vmatprep.subr.mxu0 0.0
    %1796 = vmatpush1.msra.mxu0 %v1695
    %1797 = vmatprep.subr.mxu0 0.0
    %1798 = vmatpush1.msra.mxu0 %v1694
    %1799 = vmatprep.subr.mxu0 0.0
    %1800 = vmatpush1.msra.mxu0 %v1693
    %1801 = vmatprep.subr.mxu0 0.0
    %1802 = vmatpush1.msra.mxu0 %v1692
    %1803 = vmatprep.subr.mxu0 0.0
    %1804 = vmatpush1.msra.mxu0 %v1691
    %1805 = vmatprep.subr.mxu0 0.0
    %1806 = vmatpush1.msra.mxu0 %v1690
    %1807 = vmatprep.subr.mxu0 0.0
    %1808 = vmatpush1.msra.mxu0 %v1689
    %1809 = vmatprep.subr.mxu0 0.0
    %1810 = vmatpush1.msra.mxu0 %v1688
    %1811 = vmatprep.subr.mxu0 0.0
    %1812 = vmatpush1.msra.mxu0 %v1687
    %1813 = vmatprep.subr.mxu0 0.0
    %1814 = vmatpush1.msra.mxu0 %v1686
    %1815 = vmatprep.subr.mxu0 0.0
    %1816 = vmatpush1.msra.mxu0 %v1685
    %1817 = vmatprep.subr.mxu0 0.0
    %1818 = vmatpush1.msra.mxu0 %v1684
    %1819 = vmatprep.subr.mxu0 0.0
    %1820 = vmatpush1.msra.mxu0 %v1683
    %1821 = vmatprep.subr.mxu0 0.0
    %1822 = vmatpush1.msra.mxu0 %v1682
    %1823 = vmatprep.subr.mxu0 0.0
    %1824 = vmatpush2.msra.mxu0 %v1713
    %1825 = vmatprep.subr.mxu0 0.0
    %1826 = vmatpush2.msra.mxu0 %v1712
    %1827 = vmatprep.subr.mxu0 0.0
    %1828 = vmatpush2.msra.mxu0 %v1711
    %1829 = vmatprep.subr.mxu0 0.0
    %1830 = vmatpush2.msra.mxu0 %v1710
    %1831 = vmatprep.subr.mxu0 0.0
    %1832 = vmatpush2.msra.mxu0 %v1709
    %1833 = vmatprep.subr.mxu0 0.0
    %1834 = vmatpush2.msra.mxu0 %v1708
    %1835 = vmatprep.subr.mxu0 0.0
    %1836 = vmatpush2.msra.mxu0 %v1707
    %1837 = vmatprep.subr.mxu0 0.0
    %1838 = vmatpush2.msra.mxu0 %v1706
    %1839 = vmatprep.subr.mxu0 0.0
    %1840 = vmatpush2.msra.mxu0 %v1705
    %1841 = vmatprep.subr.mxu0 0.0
    %1842 = vmatpush2.msra.mxu0 %v1704
    %1843 = vmatprep.subr.mxu0 0.0
    %1844 = vmatpush2.msra.mxu0 %v1703
    %1845 = vmatprep.subr.mxu0 0.0
    %1846 = vmatpush2.msra.mxu0 %v1702
    %1847 = vmatprep.subr.mxu0 0.0
    %1848 = vmatpush2.msra.mxu0 %v1701
    %1849 = vmatprep.subr.mxu0 0.0
    %1850 = vmatpush2.msra.mxu0 %v1700
    %1851 = vmatprep.subr.mxu0 0.0
    %1852 = vmatpush2.msra.mxu0 %v1699
    %1853 = vmatprep.subr.mxu0 0.0
    %1854 = vmatpush2.msra.mxu0 %v1698
    %1855 = vmatprep.mubr.f32.mxu0 %v1649
    %1856 = vmatmul.mubr.f32.gmra.mxu0 %v1648
    %v1857 = vpop.f32.mrf.mxu0
    %v1858 = vadd.f32 %v1788, %v1857
    %v1859 = vpop.f32.mrf.mxu0
    %1860 = vdwg.mxu0
    %v1861 = vmax.f32 %v1858, 0.0
    %v1862 = vld [vmem:[%s11] sm:$0xff]
    %v1863 = vld [vmem:[%s11 + $0x8] sm:$0xff]
    %v1864 = vld [vmem:[%s11 + $0x10] sm:$0xff]
    %v1865 = vld [vmem:[%s11 + $0x18] sm:$0xff]
    %v1866 = vld [vmem:[%s11 + $0x20] sm:$0xff]
    %v1867 = vld [vmem:[%s11 + $0x28] sm:$0xff]
    %v1868 = vld [vmem:[%s11 + $0x30] sm:$0xff]
    %v1869 = vld [vmem:[%s11 + $0x38] sm:$0xff]
    %v1870 = vld [vmem:[%s11 + $0x40] sm:$0xff]
    %v1871 = vld [vmem:[%s11 + $0x48] sm:$0xff]
    %v1872 = vld [vmem:[%s11 + $0x50] sm:$0xff]
    %v1873 = vld [vmem:[%s11 + $0x58] sm:$0xff]
    %v1874 = vld [vmem:[%s11 + $0x60] sm:$0xff]
    %v1875 = vld [vmem:[%s11 + $0x68] sm:$0xff]
    %v1876 = vld [vmem:[%s11 + $0x70] sm:$0xff]
    %v1877 = vld [vmem:[%s11 + $0x78] sm:$0xff]
    %v1878 = vld [vmem:[%s12] sm:$0x1]
    %v1880 = vlaneseq
    %v1881 = vshrl.u32 %v1880, 7
    %v1882 = vsub.s32 0, %v1881
    %v1883 = vrot.slane %v1878, %v1882
    %1885 = vmatprep.subr.mxu0 0.0
    %1886 = vmatpush1.msra.mxu0 %v1877
    %1887 = vmatprep.subr.mxu0 0.0
    %1888 = vmatpush1.msra.mxu0 %v1876
    %1889 = vmatprep.subr.mxu0 0.0
    %1890 = vmatpush1.msra.mxu0 %v1875
    %1891 = vmatprep.subr.mxu0 0.0
    %1892 = vmatpush1.msra.mxu0 %v1874
    %1893 = vmatprep.subr.mxu0 0.0
    %1894 = vmatpush1.msra.mxu0 %v1873
    %1895 = vmatprep.subr.mxu0 0.0
    %1896 = vmatpush1.msra.mxu0 %v1872
    %1897 = vmatprep.subr.mxu0 0.0
    %1898 = vmatpush1.msra.mxu0 %v1871
    %1899 = vmatprep.subr.mxu0 0.0
    %1900 = vmatpush1.msra.mxu0 %v1870
    %1901 = vmatprep.subr.mxu0 0.0
    %1902 = vmatpush1.msra.mxu0 %v1869
    %1903 = vmatprep.subr.mxu0 0.0
    %1904 = vmatpush1.msra.mxu0 %v1868
    %1905 = vmatprep.subr.mxu0 0.0
    %1906 = vmatpush1.msra.mxu0 %v1867
    %1907 = vmatprep.subr.mxu0 0.0
    %1908 = vmatpush1.msra.mxu0 %v1866
    %1909 = vmatprep.subr.mxu0 0.0
    %1910 = vmatpush1.msra.mxu0 %v1865
    %1911 = vmatprep.subr.mxu0 0.0
    %1912 = vmatpush1.msra.mxu0 %v1864
    %1913 = vmatprep.subr.mxu0 0.0
    %1914 = vmatpush1.msra.mxu0 %v1863
    %1915 = vmatprep.subr.mxu0 0.0
    %1916 = vmatpush1.msra.mxu0 %v1862
    %1917 = vmatprep.subr.mxu0 0.0
    %1918 = vmatpush2.msra.mxu0 0.0
    %1919 = vmatprep.subr.mxu0 0.0
    %1920 = vmatpush2.msra.mxu0 0.0
    %1921 = vmatprep.subr.mxu0 0.0
    %1922 = vmatpush2.msra.mxu0 0.0
    %1923 = vmatprep.subr.mxu0 0.0
    %1924 = vmatpush2.msra.mxu0 0.0
    %1925 = vmatprep.subr.mxu0 0.0
    %1926 = vmatpush2.msra.mxu0 0.0
    %1927 = vmatprep.subr.mxu0 0.0
    %1928 = vmatpush2.msra.mxu0 0.0
    %1929 = vmatprep.subr.mxu0 0.0
    %1930 = vmatpush2.msra.mxu0 0.0
    %1931 = vmatprep.subr.mxu0 0.0
    %1932 = vmatpush2.msra.mxu0 0.0
    %1933 = vmatprep.subr.mxu0 0.0
    %1934 = vmatpush2.msra.mxu0 0.0
    %1935 = vmatprep.subr.mxu0 0.0
    %1936 = vmatpush2.msra.mxu0 0.0
    %1937 = vmatprep.subr.mxu0 0.0
    %1938 = vmatpush2.msra.mxu0 0.0
    %1939 = vmatprep.subr.mxu0 0.0
    %1940 = vmatpush2.msra.mxu0 0.0
    %1941 = vmatprep.subr.mxu0 0.0
    %1942 = vmatpush2.msra.mxu0 0.0
    %1943 = vmatprep.subr.mxu0 0.0
    %1944 = vmatpush2.msra.mxu0 0.0
    %1945 = vmatprep.subr.mxu0 0.0
    %1946 = vmatpush2.msra.mxu0 0.0
    %1947 = vmatprep.subr.mxu0 0.0
    %1948 = vmatpush2.msra.mxu0 0.0
    %1949 = vmatprep.mubr.f32.mxu0 0.0
    %1950 = vmatmul.mubr.f32.gmra.mxu0 %v1861
    %v1951 = vpop.f32.mrf.mxu0
    %v1952 = vadd.f32 %v1883, %v1951
    %v1953 = vpop.f32.mrf.mxu0
    %1954 = vdwg.mxu0
    %v1955 = vmax.f32 %v1952, 0.0
    %v1956 = vld [vmem:[%s13] sm:$0xff]
    %v1957 = vld [vmem:[%s13 + $0x8] sm:$0xff]
    %v1958 = vld [vmem:[%s13 + $0x10] sm:$0xff]
    %v1959 = vld [vmem:[%s13 + $0x18] sm:$0xff]
    %v1960 = vld [vmem:[%s13 + $0x20] sm:$0xff]
    %v1961 = vld [vmem:[%s13 + $0x28] sm:$0xff]
    %v1962 = vld [vmem:[%s13 + $0x30] sm:$0xff]
    %v1963 = vld [vmem:[%s13 + $0x38] sm:$0xff]
    %v1964 = vld [vmem:[%s13 + $0x40] sm:$0xff]
    %v1965 = vld [vmem:[%s13 + $0x48] sm:$0xff]
    %v1966 = vld [vmem:[%s13 + $0x50] sm:$0xff]
    %v1967 = vld [vmem:[%s13 + $0x58] sm:$0xff]
    %v1968 = vld [vmem:[%s13 + $0x60] sm:$0xff]
    %v1969 = vld [vmem:[%s13 + $0x68] sm:$0xff]
    %v1970 = vld [vmem:[%s13 + $0x70] sm:$0xff]
    %v1971 = vld [vmem:[%s13 + $0x78] sm:$0xff]
    %v1972 = vld [vmem:[%s14] sm:$0x1]
    %v1974 = vlaneseq
    %v1975 = vshrl.u32 %v1974, 7
    %v1976 = vsub.s32 0, %v1975
    %v1977 = vrot.slane %v1972, %v1976
    %1979 = vmatprep.subr.mxu0 0.0
    %1980 = vmatpush1.msra.mxu0 %v1971
    %1981 = vmatprep.subr.mxu0 0.0
    %1982 = vmatpush1.msra.mxu0 %v1970
    %1983 = vmatprep.subr.mxu0 0.0
    %1984 = vmatpush1.msra.mxu0 %v1969
    %1985 = vmatprep.subr.mxu0 0.0
    %1986 = vmatpush1.msra.mxu0 %v1968
    %1987 = vmatprep.subr.mxu0 0.0
    %1988 = vmatpush1.msra.mxu0 %v1967
    %1989 = vmatprep.subr.mxu0 0.0
    %1990 = vmatpush1.msra.mxu0 %v1966
    %1991 = vmatprep.subr.mxu0 0.0
    %1992 = vmatpush1.msra.mxu0 %v1965
    %1993 = vmatprep.subr.mxu0 0.0
    %1994 = vmatpush1.msra.mxu0 %v1964
    %1995 = vmatprep.subr.mxu0 0.0
    %1996 = vmatpush1.msra.mxu0 %v1963
    %1997 = vmatprep.subr.mxu0 0.0
    %1998 = vmatpush1.msra.mxu0 %v1962
    %1999 = vmatprep.subr.mxu0 0.0
    %2000 = vmatpush1.msra.mxu0 %v1961
    %2001 = vmatprep.subr.mxu0 0.0
    %2002 = vmatpush1.msra.mxu0 %v1960
    %2003 = vmatprep.subr.mxu0 0.0
    %2004 = vmatpush1.msra.mxu0 %v1959
    %2005 = vmatprep.subr.mxu0 0.0
    %2006 = vmatpush1.msra.mxu0 %v1958
    %2007 = vmatprep.subr.mxu0 0.0
    %2008 = vmatpush1.msra.mxu0 %v1957
    %2009 = vmatprep.subr.mxu0 0.0
    %2010 = vmatpush1.msra.mxu0 %v1956
    %2011 = vmatprep.subr.mxu0 0.0
    %2012 = vmatpush2.msra.mxu0 0.0
    %2013 = vmatprep.subr.mxu0 0.0
    %2014 = vmatpush2.msra.mxu0 0.0
    %2015 = vmatprep.subr.mxu0 0.0
    %2016 = vmatpush2.msra.mxu0 0.0
    %2017 = vmatprep.subr.mxu0 0.0
    %2018 = vmatpush2.msra.mxu0 0.0
    %2019 = vmatprep.subr.mxu0 0.0
    %2020 = vmatpush2.msra.mxu0 0.0
    %2021 = vmatprep.subr.mxu0 0.0
    %2022 = vmatpush2.msra.mxu0 0.0
    %2023 = vmatprep.subr.mxu0 0.0
    %2024 = vmatpush2.msra.mxu0 0.0
    %2025 = vmatprep.subr.mxu0 0.0
    %2026 = vmatpush2.msra.mxu0 0.0
    %2027 = vmatprep.subr.mxu0 0.0
    %2028 = vmatpush2.msra.mxu0 0.0
    %2029 = vmatprep.subr.mxu0 0.0
    %2030 = vmatpush2.msra.mxu0 0.0
    %2031 = vmatprep.subr.mxu0 0.0
    %2032 = vmatpush2.msra.mxu0 0.0
    %2033 = vmatprep.subr.mxu0 0.0
    %2034 = vmatpush2.msra.mxu0 0.0
    %2035 = vmatprep.subr.mxu0 0.0
    %2036 = vmatpush2.msra.mxu0 0.0
    %2037 = vmatprep.subr.mxu0 0.0
    %2038 = vmatpush2.msra.mxu0 0.0
    %2039 = vmatprep.subr.mxu0 0.0
    %2040 = vmatpush2.msra.mxu0 0.0
    %2041 = vmatprep.subr.mxu0 0.0
    %2042 = vmatpush2.msra.mxu0 0.0
    %2043 = vmatprep.mubr.f32.mxu0 0.0
    %2044 = vmatmul.mubr.f32.gmra.mxu0 %v1955
    %v2045 = vpop.f32.mrf.mxu0
    %v2046 = vadd.f32 %v1977, %v2045
    %v2047 = vpop.f32.mrf.mxu0
    %2048 = vdwg.mxu0
    %2049 = vst [vmem:[%s15] sm:$0xff] %v2046
    // Predicated region
    $region74: #{lenet5_forward.1} parent=1 // pred_check
      _
    $region75: #{lenet5_forward.1} parent=1 // pred_check_branch
      %2051 = sbr.rel (0) target = $region77
    $region76: #{lenet5_forward.1} parent=1 // pred_region
      _
    $region77: #{lenet5_forward.1} parent=1 // pred_fallthru
      _
    // Predicated region
    $region78: #{lenet5_forward.1} parent=1 // pred_check
      _
    $region79: #{lenet5_forward.1} parent=1 // pred_check_branch
      %2053 = sbr.rel (0) target = $region81
    $region80: #{lenet5_forward.1} parent=1 // pred_region
      _
    $region81: #{lenet5_forward.1} parent=1 // pred_fallthru
      _
    %2054 = vsyncpa [#allocation3], 1
    %2055 = vsyncpa [#allocation5], 1

</llo_original>
